<compile_context>
chip_gen: v7x
topology: tpu7x:2x2x1
jax: 0.10.0
libtpu: 0.0.40
codegen_flags: <defaults>
</compile_context>

<pallas_src>
import functools

import jax
import jax.numpy as jnp
from jax.experimental import pallas as pl
from jax.experimental.pallas import tpu as pltpu


def _round_up(v, m):
    return (v + m - 1) // m * m


# ---------------------------------------------------------------------------
# Weight repacking (pure JAX, run ONCE outside the jitted forward)
# ---------------------------------------------------------------------------
def _pack_conv1(w1, b1, wdtype):
    """Merged banded/im2col conv1 weights: T1 (5*28, 2*C1*12).

    T1[i*28+cx, par*(C1*12)+c*12+ox'] = w1[c,0,i, cx-(2*ox'+par)] inside the
    5-tap band, 0 outside.  Output columns are pool-column-parity major so the
    2x2 column pool is a max of two contiguous lane halves in the kernel.
    """
    c1 = w1.shape[0]
    i = jnp.arange(5).reshape(5, 1, 1, 1, 1)
    cx = jnp.arange(28).reshape(1, 28, 1, 1, 1)
    par = jnp.arange(2).reshape(1, 1, 2, 1, 1)
    c = jnp.arange(c1).reshape(1, 1, 1, c1, 1)
    ox = jnp.arange(12).reshape(1, 1, 1, 1, 12)
    j = cx - (2 * ox + par)
    vals = w1[c, 0, i, jnp.clip(j, 0, 4)]
    t1 = jnp.where((j >= 0) & (j < 5), vals, 0.0)
    t1 = t1.reshape(5 * 28, 2 * c1 * 12).astype(wdtype)
    b1t = jnp.tile(jnp.repeat(b1, 12), 2).reshape(1, 2 * c1 * 12).astype(jnp.float32)
    return t1, b1t


def _pack_conv2(w2, b2, wdtype):
    """Merged banded conv2 weights: T2 (5*C1*12, 2*C2*4); the sums over kernel
    row i and input channel ci are both folded into one matmul."""
    c2, c1 = w2.shape[0], w2.shape[1]
    i = jnp.arange(5).reshape(5, 1, 1, 1, 1, 1)
    ci = jnp.arange(c1).reshape(1, c1, 1, 1, 1, 1)
    xx = jnp.arange(12).reshape(1, 1, 12, 1, 1, 1)
    par = jnp.arange(2).reshape(1, 1, 1, 2, 1, 1)
    co = jnp.arange(c2).reshape(1, 1, 1, 1, c2, 1)
    ox = jnp.arange(4).reshape(1, 1, 1, 1, 1, 4)
    j = xx - (2 * ox + par)
    vals = w2[co, ci, i, jnp.clip(j, 0, 4)]
    t2 = jnp.where((j >= 0) & (j < 5), vals, 0.0)
    t2 = t2.reshape(5 * c1 * 12, 2 * c2 * 4).astype(wdtype)
    b2t = jnp.tile(jnp.repeat(b2, 4), 2).reshape(1, 2 * c2 * 4).astype(jnp.float32)
    return t2, b2t


def _pack_fc(wfc1, bfc1, wfc2, bfc2, c2, wdtype):
    """fc1 weights with the torch NCHW-flatten permutation folded in, rows in
    the kernel's (y, c, x) lane order; fc1 padded 500->512 and fc2 padded to
    128 output lanes so both matmuls / the kernel output are lane-dense."""
    nfc, nin = wfc1.shape
    assert nin == 16 * c2
    nfc_pad = _round_up(nfc, 128)
    ncls = wfc2.shape[0]
    ncls_pad = _round_up(max(ncls, 128), 128)

    w = wfc1.T.reshape(c2, 4, 4, nfc)                       # [c2, y, x, out]
    w = jnp.transpose(w, (1, 0, 2, 3)).reshape(16 * c2, nfc)  # row = y*4c2 + c*4 + x
    wfc1p = jnp.pad(w, ((0, 0), (0, nfc_pad - nfc))).astype(wdtype)
    bfc1p = jnp.pad(bfc1, (0, nfc_pad - nfc)).reshape(1, nfc_pad).astype(jnp.float32)

    wfc2p = jnp.zeros((nfc_pad, ncls_pad), jnp.float32).at[:nfc, :ncls].set(wfc2.T)
    wfc2p = wfc2p.astype(wdtype)
    bfc2p = jnp.zeros((1, ncls_pad), jnp.float32).at[0, :ncls].set(bfc2)
    return wfc1p, bfc1p, wfc2p, bfc2p


def pack_params(params, compute_dtype=jnp.bfloat16):
    """Pack all weights once (call this OUTSIDE jit / the per-step path)."""
    c2 = params["w2"].shape[0]
    t1, b1t = _pack_conv1(params["w1"], params["b1"], compute_dtype)
    t2, b2t = _pack_conv2(params["w2"], params["b2"], compute_dtype)
    wfc1p, bfc1p, wfc2p, bfc2p = _pack_fc(params["wfc1"], params["bfc1"],
                                          params["wfc2"], params["bfc2"], c2,
                                          compute_dtype)
    return dict(t1=t1, b1t=b1t, t2=t2, b2t=b2t,
                wfc1=wfc1p, bfc1=bfc1p, wfc2=wfc2p, bfc2=bfc2p)


# ---------------------------------------------------------------------------
# Fused Pallas kernel: one batch tile = whole network, 5 MXU dots total
# ---------------------------------------------------------------------------
def _mnist_cnn_kernel(x_ref, t1_ref, b1_ref, t2_ref, b2_ref,
                      wfc1_ref, bfc1_ref, wfc2_ref, bfc2_ref, out_ref):
    f32 = jnp.float32
    cdt = t1_ref.dtype                      # MXU operand dtype (bf16)
    tb = out_ref.shape[0]                   # images in this batch tile
    k1 = x_ref.shape[2]                     # 140 = 5*28 im2col columns
    w1w = t1_ref.shape[1]                   # 2*C1*12 (col-parity major)
    cw1 = w1w // 2                          # C1*12 (after column pool)
    w2w = t2_ref.shape[1]                   # 2*C2*4
    cw2 = w2w // 2                          # C2*4

    # --- conv1 + ReLU: ONE K=140 bf16 matmul over all 24 output rows -------
    # x_ref rows r = half*12 + g*6 + t correspond to output row oy = 4t+2g+half.
    lhs1 = x_ref[...].reshape(24 * tb, k1).astype(cdt)
    h1 = jnp.dot(lhs1, t1_ref[...], preferred_element_type=f32) + b1_ref[...]
    h1 = jnp.maximum(h1, 0.0)
    # 2x2 max-pool: rows = max of the (even | odd) halves, cols = max of the
    # two contiguous column-parity lane halves.
    rp = jnp.maximum(h1[:12 * tb, :], h1[12 * tb:, :])
    hp1 = jnp.maximum(rp[:, :cw1], rp[:, cw1:]).astype(cdt).reshape(12, tb, cw1)
    # hp1[g*6 + t] = pooled conv1 row y = 2*t + g  (lane = c*12 + pooled x)

    # --- conv2 + ReLU: ONE K=5*C1*12 bf16 matmul per row-pool parity --------
    m2 = None
    for p in range(2):                      # conv2 output-row parity in pool
        rows = []
        for i in range(5):                  # pooled input row = 2*y2 + p + i
            par, t0 = (p + i) % 2, (p + i) // 2
            rows.append(hp1[6 * par + t0: 6 * par + t0 + 4])   # (4, tb, cw1)
        lhs2 = jnp.concatenate(rows, axis=-1).reshape(4 * tb, 5 * cw1)
        h2 = jnp.dot(lhs2, t2_ref[...], preferred_element_type=f32) + b2_ref[...]
        h2 = jnp.maximum(h2, 0.0)
        m2 = h2 if m2 is None else jnp.maximum(m2, h2)          # row pool
    hp2 = jnp.maximum(m2[:, :cw2], m2[:, cw2:]).astype(cdt).reshape(4, tb, cw2)

    # --- fc1 + ReLU: one lane-dense (tb, 16*C2) x (16*C2, 512) matmul -------
    z0 = jnp.concatenate([hp2[y] for y in range(4)], axis=-1)   # (tb, 4*cw2)
    z1 = jnp.dot(z0, wfc1_ref[...], preferred_element_type=f32) + bfc1_ref[...]
    z1 = jnp.maximum(z1, 0.0).astype(cdt)

    # --- fc2 (padded to 128 output lanes -> unmasked stores) ----------------
    out = jnp.dot(z1, wfc2_ref[...], preferred_element_type=f32) + bfc2_ref[...]
    out_ref[...] = out.astype(out_ref.dtype)


# ---------------------------------------------------------------------------
# Wrapper
# ---------------------------------------------------------------------------
def mnist_cnn_forward(x_nchw, packed, *, num_classes, block_batch=None):
    n, cin, hh, ww = x_nchw.shape
    assert cin == 1 and hh == 28 and ww == 28, "MnistCNN expects (N, 1, 28, 28)"

    t1, b1t = packed["t1"], packed["b1t"]
    t2, b2t = packed["t2"], packed["b2t"]
    wfc1p, bfc1p = packed["wfc1"], packed["bfc1"]
    wfc2p, bfc2p = packed["wfc2"], packed["bfc2"]
    nfc_pad = wfc1p.shape[1]
    ncls_pad = wfc2p.shape[1]
    c1 = t1.shape[1] // 24
    c2 = t2.shape[1] // 8

    # Batch tile: big tiles amortize the ~0.35us per-grid-step overhead; for
    # mid-size batches split into >= 2 tiles so the "parallel" grid axis can
    # shard across both v7x TensorCores.  Cap 256 keeps VMEM well under 40 MiB.
    if block_batch is None:
        tb = max(8, min(256, _round_up((n + 1) // 2, 8)))
    else:
        tb = block_batch
    assert tb % 8 == 0, "batch tile must be a multiple of 8 (sublane tiling)"
    n_pad = _round_up(n, tb)

    # im2col-lite for conv1 (per-output-row 5x28 window along lanes) + row
    # reordering so that the kernel's row/lane pools are contiguous slices:
    #   row r = half*12 + g*6 + t  ->  conv1 output row oy = 4*t + 2*g + half.
    x = x_nchw.reshape(n, 28, 28).astype(jnp.float32)
    if n_pad != n:
        x = jnp.pad(x, ((0, n_pad - n), (0, 0), (0, 0)))
    win = jnp.concatenate([x[:, i:i + 24, :] for i in range(5)], axis=-1)  # (n,24,140)
    xcol = jnp.transpose(win.reshape(n_pad, 6, 2, 2, 140),
                         (3, 2, 1, 0, 4)).reshape(24, n_pad, 140)

    grid = (n_pad // tb,)
    const2 = lambda b: (0, 0)

    flops = 2 * n_pad * (24 * 24 * 25 * c1 + 8 * 8 * 25 * c1 * c2
                         + 16 * c2 * nfc_pad + nfc_pad * ncls_pad)
    bytes_accessed = int(sum(a.size * a.dtype.itemsize for a in
                             (xcol, t1, b1t, t2, b2t, wfc1p, bfc1p, wfc2p, bfc2p))
                         + n_pad * ncls_pad * 4)

    out = pl.pallas_call(
        _mnist_cnn_kernel,
        out_shape=jax.ShapeDtypeStruct((n_pad, ncls_pad), jnp.float32),
        grid=grid,
        in_specs=[
            pl.BlockSpec((24, tb, 140), lambda b: (0, b, 0)),
            # Weights/biases: whole array, constant index_map -> VMEM resident
            # for the whole grid (total ~0.6 MB).
            pl.BlockSpec(t1.shape, const2),
            pl.BlockSpec(b1t.shape, const2),
            pl.BlockSpec(t2.shape, const2),
            pl.BlockSpec(b2t.shape, const2),
            pl.BlockSpec(wfc1p.shape, const2),
            pl.BlockSpec(bfc1p.shape, const2),
            pl.BlockSpec(wfc2p.shape, const2),
            pl.BlockSpec(bfc2p.shape, const2),
        ],
        out_specs=pl.BlockSpec((tb, ncls_pad), lambda b: (b, 0)),
        compiler_params=pltpu.CompilerParams(
            dimension_semantics=("parallel",),
            vmem_limit_bytes=40 * 1024 * 1024),
        cost_estimate=pl.CostEstimate(flops=flops, transcendentals=0,
                                      bytes_accessed=bytes_accessed),
    )(xcol, t1, b1t, t2, b2t, wfc1p, bfc1p, wfc2p, bfc2p)

    return out[:n, :num_classes]


# ---------------------------------------------------------------------------
# Pure-JAX reference (numerical sanity check only)
# ---------------------------------------------------------------------------
def _maxpool2x2_ref(x):
    n, c, h, w = x.shape
    return x.reshape(n, c, h // 2, 2, w // 2, 2).max(axis=(3, 5))


def mnist_cnn_reference(x_nchw, params):
    dn = ("NCHW", "OIHW", "NCHW")
    x = jax.lax.conv_general_dilated(x_nchw, params["w1"], (1, 1), "VALID",
                                     dimension_numbers=dn)
    x = jax.nn.relu(x + params["b1"].reshape(1, -1, 1, 1))
    x = _maxpool2x2_ref(x)
    x = jax.lax.conv_general_dilated(x, params["w2"], (1, 1), "VALID",
                                     dimension_numbers=dn)
    x = jax.nn.relu(x + params["b2"].reshape(1, -1, 1, 1))
    x = _maxpool2x2_ref(x)
    x = x.reshape(x.shape[0], -1)
    x = jax.nn.relu(x @ params["wfc1"].T + params["bfc1"])
    return x @ params["wfc2"].T + params["bfc2"]


# ---------------------------------------------------------------------------
# Deterministic parameter init (PyTorch-style uniform(-1/sqrt(fan_in), ...))
# ---------------------------------------------------------------------------
def init_params(key, num_conv_1, num_conv_2, num_classes, num_fc=500):
    ks = jax.random.split(key, 8)

    def u(k, shape, fan_in):
        bound = 1.0 / (fan_in ** 0.5)
        return jax.random.uniform(k, shape, jnp.float32, -bound, bound)

    return {
        "w1": u(ks[0], (num_conv_1, 1, 5, 5), 1 * 25),
        "b1": u(ks[1], (num_conv_1,), 1 * 25),
        "w2": u(ks[2], (num_conv_2, num_conv_1, 5, 5), num_conv_1 * 25),
        "b2": u(ks[3], (num_conv_2,), num_conv_1 * 25),
        "wfc1": u(ks[4], (num_fc, 16 * num_conv_2), 16 * num_conv_2),
        "bfc1": u(ks[5], (num_fc,), 16 * num_conv_2),
        "wfc2": u(ks[6], (num_classes, num_fc), num_fc),
        "bfc2": u(ks[7], (num_classes,), num_fc),
    }


if __name__ == "__main__":
    NUM_CONV_1, NUM_CONV_2, NUM_CLASSES = 4, 8, 10
    BATCH = 2

    key = jax.random.PRNGKey(0)
    k_params, k_x = jax.random.split(key)
    params = init_params(k_params, NUM_CONV_1, NUM_CONV_2, NUM_CLASSES)

    # MNIST-shaped input (28x28 is required by the 4*4*NUM_CONV_2 flatten).
    x = jax.random.normal(k_x, (BATCH, 1, 28, 28), dtype=jnp.float32)

    # Weight repacking hoisted out of the per-call jitted path (done once).
    packed = pack_params(params)
    fwd = jax.jit(functools.partial(mnist_cnn_forward, num_classes=NUM_CLASSES))

    logits = fwd(x, packed)
    jax.block_until_ready(logits)
    assert logits.shape == (BATCH, NUM_CLASSES), logits.shape

    # Numerical sanity check against a plain f32 XLA implementation.
    # Tolerance reflects bf16 MXU operands with f32 accumulation.
    ref = mnist_cnn_reference(x, params)
    max_err = float(jnp.max(jnp.abs(logits - ref)))
    assert max_err < 3e-2, f"mismatch vs reference: max abs err = {max_err}"

    print("KERNEL_OK")
</pallas_src>

<mosaic_0001>
module attributes {stable_mosaic.version = 11 : i64} {
  func.func @_mnist_cnn_kernel(%arg0: i32, %arg1: memref<24x8x140xf32, #tpu.memory_space<vmem>>, %arg2: memref<140x96xbf16, #tpu.memory_space<vmem>>, %arg3: memref<1x96xf32, #tpu.memory_space<vmem>>, %arg4: memref<240x64xbf16, #tpu.memory_space<vmem>>, %arg5: memref<1x64xf32, #tpu.memory_space<vmem>>, %arg6: memref<128x512xbf16, #tpu.memory_space<vmem>>, %arg7: memref<1x512xf32, #tpu.memory_space<vmem>>, %arg8: memref<512x128xbf16, #tpu.memory_space<vmem>>, %arg9: memref<1x128xf32, #tpu.memory_space<vmem>>, %arg10: memref<8x128xf32, #tpu.memory_space<vmem>>) attributes {dimension_semantics = [#tpu.dimension_semantics<parallel>], iteration_bounds = array<i64: 1>, scalar_prefetch = 0 : i64, scratch_operands = 0 : i64, tpu.core_type = #tpu.core_type<tc>, window_params = [{transform_indices = @transform_0, window_bounds = array<i64: 24, 8, 140>}, {pipeline_mode = #tpu.pipeline_mode<synchronous>, transform_indices = @transform_1, window_bounds = array<i64: 140, 96>}, {pipeline_mode = #tpu.pipeline_mode<synchronous>, transform_indices = @transform_2, window_bounds = array<i64: 1, 96>}, {pipeline_mode = #tpu.pipeline_mode<synchronous>, transform_indices = @transform_3, window_bounds = array<i64: 240, 64>}, {pipeline_mode = #tpu.pipeline_mode<synchronous>, transform_indices = @transform_4, window_bounds = array<i64: 1, 64>}, {pipeline_mode = #tpu.pipeline_mode<synchronous>, transform_indices = @transform_5, window_bounds = array<i64: 128, 512>}, {pipeline_mode = #tpu.pipeline_mode<synchronous>, transform_indices = @transform_6, window_bounds = array<i64: 1, 512>}, {pipeline_mode = #tpu.pipeline_mode<synchronous>, transform_indices = @transform_7, window_bounds = array<i64: 512, 128>}, {pipeline_mode = #tpu.pipeline_mode<synchronous>, transform_indices = @transform_8, window_bounds = array<i64: 1, 128>}, {transform_indices = @transform_9, window_bounds = array<i64: 8, 128>}]} {
    %c0 = arith.constant 0 : index
    %c0_0 = arith.constant 0 : index
    %c0_1 = arith.constant 0 : index
    %0 = vector.load %arg1[%c0, %c0_0, %c0_1] : memref<24x8x140xf32, #tpu.memory_space<vmem>>, vector<24x8x140xf32>
    %1 = vector.shape_cast %0 : vector<24x8x140xf32> to vector<192x140xf32>
    %2 = arith.truncf %1 : vector<192x140xf32> to vector<192x140xbf16>
    %c0_2 = arith.constant 0 : index
    %c0_3 = arith.constant 0 : index
    %3 = vector.load %arg2[%c0_2, %c0_3] : memref<140x96xbf16, #tpu.memory_space<vmem>>, vector<140x96xbf16>
    %cst = arith.constant dense<0.000000e+00> : vector<192x96xf32>
    %4 = tpu.matmul %2, %3, %cst {dimension_numbers = #tpu.dot_dimension_numbers<[1], [0], [0], [1], [0, 0, 1, 1], [], []>} : vector<192x140xbf16>, vector<140x96xbf16>, vector<192x96xf32> -> vector<192x96xf32>
    %c0_4 = arith.constant 0 : index
    %c0_5 = arith.constant 0 : index
    %5 = vector.load %arg3[%c0_4, %c0_5] : memref<1x96xf32, #tpu.memory_space<vmem>>, vector<1x96xf32>
    %6 = vector.broadcast %5 : vector<1x96xf32> to vector<192x96xf32>
    %7 = arith.addf %4, %6 : vector<192x96xf32>
    %cst_6 = arith.constant 0.000000e+00 : f32
    %8 = vector.broadcast %cst_6 : f32 to vector<192x96xf32>
    %9 = arith.maximumf %7, %8 : vector<192x96xf32>
    %10 = vector.extract_strided_slice %9 {offsets = [0, 0], sizes = [96, 96], strides = [1, 1]} : vector<192x96xf32> to vector<96x96xf32>
    %11 = vector.extract_strided_slice %9 {offsets = [96, 0], sizes = [96, 96], strides = [1, 1]} : vector<192x96xf32> to vector<96x96xf32>
    %12 = arith.maximumf %10, %11 : vector<96x96xf32>
    %13 = vector.extract_strided_slice %12 {offsets = [0, 0], sizes = [96, 48], strides = [1, 1]} : vector<96x96xf32> to vector<96x48xf32>
    %14 = vector.extract_strided_slice %12 {offsets = [0, 48], sizes = [96, 48], strides = [1, 1]} : vector<96x96xf32> to vector<96x48xf32>
    %15 = arith.maximumf %13, %14 : vector<96x48xf32>
    %16 = arith.truncf %15 : vector<96x48xf32> to vector<96x48xbf16>
    %17 = vector.shape_cast %16 : vector<96x48xbf16> to vector<12x8x48xbf16>
    %18 = vector.extract_strided_slice %17 {offsets = [0, 0, 0], sizes = [4, 8, 48], strides = [1, 1, 1]} : vector<12x8x48xbf16> to vector<4x8x48xbf16>
    %19 = vector.extract_strided_slice %17 {offsets = [6, 0, 0], sizes = [4, 8, 48], strides = [1, 1, 1]} : vector<12x8x48xbf16> to vector<4x8x48xbf16>
    %20 = vector.extract_strided_slice %17 {offsets = [1, 0, 0], sizes = [4, 8, 48], strides = [1, 1, 1]} : vector<12x8x48xbf16> to vector<4x8x48xbf16>
    %21 = vector.extract_strided_slice %17 {offsets = [7, 0, 0], sizes = [4, 8, 48], strides = [1, 1, 1]} : vector<12x8x48xbf16> to vector<4x8x48xbf16>
    %22 = vector.extract_strided_slice %17 {offsets = [2, 0, 0], sizes = [4, 8, 48], strides = [1, 1, 1]} : vector<12x8x48xbf16> to vector<4x8x48xbf16>
    %23 = tpu.concatenate %18, %19, %20, %21, %22 in 2 : vector<4x8x48xbf16>, vector<4x8x48xbf16>, vector<4x8x48xbf16>, vector<4x8x48xbf16>, vector<4x8x48xbf16> -> vector<4x8x240xbf16>
    %24 = vector.shape_cast %23 : vector<4x8x240xbf16> to vector<32x240xbf16>
    %c0_7 = arith.constant 0 : index
    %c0_8 = arith.constant 0 : index
    %25 = vector.load %arg4[%c0_7, %c0_8] : memref<240x64xbf16, #tpu.memory_space<vmem>>, vector<240x64xbf16>
    %cst_9 = arith.constant dense<0.000000e+00> : vector<32x64xf32>
    %26 = tpu.matmul %24, %25, %cst_9 {dimension_numbers = #tpu.dot_dimension_numbers<[1], [0], [0], [1], [0, 0, 1, 1], [], []>} : vector<32x240xbf16>, vector<240x64xbf16>, vector<32x64xf32> -> vector<32x64xf32>
    %c0_10 = arith.constant 0 : index
    %c0_11 = arith.constant 0 : index
    %27 = vector.load %arg5[%c0_10, %c0_11] : memref<1x64xf32, #tpu.memory_space<vmem>>, vector<1x64xf32>
    %28 = vector.broadcast %27 : vector<1x64xf32> to vector<32x64xf32>
    %29 = arith.addf %26, %28 : vector<32x64xf32>
    %cst_12 = arith.constant 0.000000e+00 : f32
    %30 = vector.broadcast %cst_12 : f32 to vector<32x64xf32>
    %31 = arith.maximumf %29, %30 : vector<32x64xf32>
    %32 = vector.extract_strided_slice %17 {offsets = [6, 0, 0], sizes = [4, 8, 48], strides = [1, 1, 1]} : vector<12x8x48xbf16> to vector<4x8x48xbf16>
    %33 = vector.extract_strided_slice %17 {offsets = [1, 0, 0], sizes = [4, 8, 48], strides = [1, 1, 1]} : vector<12x8x48xbf16> to vector<4x8x48xbf16>
    %34 = vector.extract_strided_slice %17 {offsets = [7, 0, 0], sizes = [4, 8, 48], strides = [1, 1, 1]} : vector<12x8x48xbf16> to vector<4x8x48xbf16>
    %35 = vector.extract_strided_slice %17 {offsets = [2, 0, 0], sizes = [4, 8, 48], strides = [1, 1, 1]} : vector<12x8x48xbf16> to vector<4x8x48xbf16>
    %36 = vector.extract_strided_slice %17 {offsets = [8, 0, 0], sizes = [4, 8, 48], strides = [1, 1, 1]} : vector<12x8x48xbf16> to vector<4x8x48xbf16>
    %37 = tpu.concatenate %32, %33, %34, %35, %36 in 2 : vector<4x8x48xbf16>, vector<4x8x48xbf16>, vector<4x8x48xbf16>, vector<4x8x48xbf16>, vector<4x8x48xbf16> -> vector<4x8x240xbf16>
    %38 = vector.shape_cast %37 : vector<4x8x240xbf16> to vector<32x240xbf16>
    %c0_13 = arith.constant 0 : index
    %c0_14 = arith.constant 0 : index
    %39 = vector.load %arg4[%c0_13, %c0_14] : memref<240x64xbf16, #tpu.memory_space<vmem>>, vector<240x64xbf16>
    %cst_15 = arith.constant dense<0.000000e+00> : vector<32x64xf32>
    %40 = tpu.matmul %38, %39, %cst_15 {dimension_numbers = #tpu.dot_dimension_numbers<[1], [0], [0], [1], [0, 0, 1, 1], [], []>} : vector<32x240xbf16>, vector<240x64xbf16>, vector<32x64xf32> -> vector<32x64xf32>
    %c0_16 = arith.constant 0 : index
    %c0_17 = arith.constant 0 : index
    %41 = vector.load %arg5[%c0_16, %c0_17] : memref<1x64xf32, #tpu.memory_space<vmem>>, vector<1x64xf32>
    %42 = vector.broadcast %41 : vector<1x64xf32> to vector<32x64xf32>
    %43 = arith.addf %40, %42 : vector<32x64xf32>
    %cst_18 = arith.constant 0.000000e+00 : f32
    %44 = vector.broadcast %cst_18 : f32 to vector<32x64xf32>
    %45 = arith.maximumf %43, %44 : vector<32x64xf32>
    %46 = arith.maximumf %31, %45 : vector<32x64xf32>
    %47 = vector.extract_strided_slice %46 {offsets = [0, 0], sizes = [32, 32], strides = [1, 1]} : vector<32x64xf32> to vector<32x32xf32>
    %48 = vector.extract_strided_slice %46 {offsets = [0, 32], sizes = [32, 32], strides = [1, 1]} : vector<32x64xf32> to vector<32x32xf32>
    %49 = arith.maximumf %47, %48 : vector<32x32xf32>
    %50 = arith.truncf %49 : vector<32x32xf32> to vector<32x32xbf16>
    %51 = vector.shape_cast %50 : vector<32x32xbf16> to vector<4x8x32xbf16>
    %52 = vector.extract_strided_slice %51 {offsets = [0, 0, 0], sizes = [1, 8, 32], strides = [1, 1, 1]} : vector<4x8x32xbf16> to vector<1x8x32xbf16>
    %53 = vector.shape_cast %52 : vector<1x8x32xbf16> to vector<8x32xbf16>
    %54 = vector.extract_strided_slice %51 {offsets = [1, 0, 0], sizes = [1, 8, 32], strides = [1, 1, 1]} : vector<4x8x32xbf16> to vector<1x8x32xbf16>
    %55 = vector.shape_cast %54 : vector<1x8x32xbf16> to vector<8x32xbf16>
    %56 = vector.extract_strided_slice %51 {offsets = [2, 0, 0], sizes = [1, 8, 32], strides = [1, 1, 1]} : vector<4x8x32xbf16> to vector<1x8x32xbf16>
    %57 = vector.shape_cast %56 : vector<1x8x32xbf16> to vector<8x32xbf16>
    %58 = vector.extract_strided_slice %51 {offsets = [3, 0, 0], sizes = [1, 8, 32], strides = [1, 1, 1]} : vector<4x8x32xbf16> to vector<1x8x32xbf16>
    %59 = vector.shape_cast %58 : vector<1x8x32xbf16> to vector<8x32xbf16>
    %60 = tpu.concatenate %53, %55, %57, %59 in 1 : vector<8x32xbf16>, vector<8x32xbf16>, vector<8x32xbf16>, vector<8x32xbf16> -> vector<8x128xbf16>
    %c0_19 = arith.constant 0 : index
    %c0_20 = arith.constant 0 : index
    %61 = vector.load %arg6[%c0_19, %c0_20] : memref<128x512xbf16, #tpu.memory_space<vmem>>, vector<128x512xbf16>
    %cst_21 = arith.constant dense<0.000000e+00> : vector<8x512xf32>
    %62 = tpu.matmul %60, %61, %cst_21 {dimension_numbers = #tpu.dot_dimension_numbers<[1], [0], [0], [1], [0, 0, 1, 1], [], []>} : vector<8x128xbf16>, vector<128x512xbf16>, vector<8x512xf32> -> vector<8x512xf32>
    %c0_22 = arith.constant 0 : index
    %c0_23 = arith.constant 0 : index
    %63 = vector.load %arg7[%c0_22, %c0_23] : memref<1x512xf32, #tpu.memory_space<vmem>>, vector<1x512xf32>
    %64 = vector.broadcast %63 : vector<1x512xf32> to vector<8x512xf32>
    %65 = arith.addf %62, %64 : vector<8x512xf32>
    %cst_24 = arith.constant 0.000000e+00 : f32
    %66 = vector.broadcast %cst_24 : f32 to vector<8x512xf32>
    %67 = arith.maximumf %65, %66 : vector<8x512xf32>
    %68 = arith.truncf %67 : vector<8x512xf32> to vector<8x512xbf16>
    %c0_25 = arith.constant 0 : index
    %c0_26 = arith.constant 0 : index
    %69 = vector.load %arg8[%c0_25, %c0_26] : memref<512x128xbf16, #tpu.memory_space<vmem>>, vector<512x128xbf16>
    %cst_27 = arith.constant dense<0.000000e+00> : vector<8x128xf32>
    %70 = tpu.matmul %68, %69, %cst_27 {dimension_numbers = #tpu.dot_dimension_numbers<[1], [0], [0], [1], [0, 0, 1, 1], [], []>} : vector<8x512xbf16>, vector<512x128xbf16>, vector<8x128xf32> -> vector<8x128xf32>
    %c0_28 = arith.constant 0 : index
    %c0_29 = arith.constant 0 : index
    %71 = vector.load %arg9[%c0_28, %c0_29] : memref<1x128xf32, #tpu.memory_space<vmem>>, vector<1x128xf32>
    %72 = vector.broadcast %71 : vector<1x128xf32> to vector<8x128xf32>
    %73 = arith.addf %70, %72 : vector<8x128xf32>
    %c0_30 = arith.constant 0 : index
    %c0_31 = arith.constant 0 : index
    %74 = vector.load %arg10[%c0_30, %c0_31] : memref<8x128xf32, #tpu.memory_space<vmem>>, vector<8x128xf32>
    tpu.vector_store %arg10[%c0_30, %c0_31], %73 {strides = array<i32>} : memref<8x128xf32, #tpu.memory_space<vmem>>, vector<8x128xf32>,
    return
  }
  func.func @transform_0(%arg0: i32) -> (i32, i32, i32) {
    %c0_i32 = arith.constant 0 : i32
    %c0_i32_0 = arith.constant 0 : i32
    %c0_i32_1 = arith.constant 0 : i32
    return %c0_i32, %arg0, %c0_i32_0 : i32, i32, i32
  }
  func.func @transform_1(%arg0: i32) -> (i32, i32) {
    %c0_i32 = arith.constant 0 : i32
    %c0_i32_0 = arith.constant 0 : i32
    %c0_i32_1 = arith.constant 0 : i32
    return %c0_i32, %c0_i32_0 : i32, i32
  }
  func.func @transform_2(%arg0: i32) -> (i32, i32) {
    %c0_i32 = arith.constant 0 : i32
    %c0_i32_0 = arith.constant 0 : i32
    %c0_i32_1 = arith.constant 0 : i32
    return %c0_i32, %c0_i32_0 : i32, i32
  }
  func.func @transform_3(%arg0: i32) -> (i32, i32) {
    %c0_i32 = arith.constant 0 : i32
    %c0_i32_0 = arith.constant 0 : i32
    %c0_i32_1 = arith.constant 0 : i32
    return %c0_i32, %c0_i32_0 : i32, i32
  }
  func.func @transform_4(%arg0: i32) -> (i32, i32) {
    %c0_i32 = arith.constant 0 : i32
    %c0_i32_0 = arith.constant 0 : i32
    %c0_i32_1 = arith.constant 0 : i32
    return %c0_i32, %c0_i32_0 : i32, i32
  }
  func.func @transform_5(%arg0: i32) -> (i32, i32) {
    %c0_i32 = arith.constant 0 : i32
    %c0_i32_0 = arith.constant 0 : i32
    %c0_i32_1 = arith.constant 0 : i32
    return %c0_i32, %c0_i32_0 : i32, i32
  }
  func.func @transform_6(%arg0: i32) -> (i32, i32) {
    %c0_i32 = arith.constant 0 : i32
    %c0_i32_0 = arith.constant 0 : i32
    %c0_i32_1 = arith.constant 0 : i32
    return %c0_i32, %c0_i32_0 : i32, i32
  }
  func.func @transform_7(%arg0: i32) -> (i32, i32) {
    %c0_i32 = arith.constant 0 : i32
    %c0_i32_0 = arith.constant 0 : i32
    %c0_i32_1 = arith.constant 0 : i32
    return %c0_i32, %c0_i32_0 : i32, i32
  }
  func.func @transform_8(%arg0: i32) -> (i32, i32) {
    %c0_i32 = arith.constant 0 : i32
    %c0_i32_0 = arith.constant 0 : i32
    %c0_i32_1 = arith.constant 0 : i32
    return %c0_i32, %c0_i32_0 : i32, i32
  }
  func.func @transform_9(%arg0: i32) -> (i32, i32) {
    %c0_i32 = arith.constant 0 : i32
    %c0_i32_0 = arith.constant 0 : i32
    return %arg0, %c0_i32 : i32, i32
  }
}

</mosaic_0001>

<llo_original>
// kernel: mnist_cnn_forward.1
$region0: #{mnist_cnn_forward.1}
  #allocation0 [shape = 'u32[]', space=smem, size = 0x4, offset = 0x4, fixed_abs, tag = 'smem constant byte address 0x4 - core index']
  #allocation1 [shape = 'u32[144,128]{1,0:T(1,128)}', space=vmem, size = 0x12000, scoped, tag = 'internal scratch']
  %s0 = inlined_call_operand.vmem [shape: f32[24,8,140], index: 0, kind: input, shape index: {}]
  %s1 = inlined_call_operand.vmem [shape: bf16[140,96], index: 1, kind: input, shape index: {}]
  %s2 = inlined_call_operand.vmem [shape: f32[1,96], index: 2, kind: input, shape index: {}]
  %s3 = inlined_call_operand.vmem [shape: bf16[240,64], index: 3, kind: input, shape index: {}]
  %s4 = inlined_call_operand.vmem [shape: f32[1,64], index: 4, kind: input, shape index: {}]
  %s5 = inlined_call_operand.vmem [shape: bf16[128,512], index: 5, kind: input, shape index: {}]
  %s6 = inlined_call_operand.vmem [shape: f32[1,512], index: 6, kind: input, shape index: {}]
  %s7 = inlined_call_operand.vmem [shape: bf16[512,128], index: 7, kind: input, shape index: {}]
  %s8 = inlined_call_operand.vmem [shape: f32[1,128], index: 8, kind: input, shape index: {}]
  %s9 = inlined_call_operand.vmem [shape: f32[8,128], index: 9, kind: output, shape index: {}]
  %s10 = sld [smem:[#allocation0]]
  $region46: #{mnist_cnn_forward.1} parent=0
    _
  %s12 = ssub.s32 1, %s10
  %s13 = scalar_select 0, %s12, %s10
  // Predicated region
  $region2: #{mnist_cnn_forward.1} parent=0 // pred_check
    _
  $region3: #{mnist_cnn_forward.1} parent=0 // pred_check_branch
    %15 = sbr.rel (0) target = $region5
  $region4: #{mnist_cnn_forward.1} parent=0 // pred_region
    _
  $region5: #{mnist_cnn_forward.1} parent=0 // pred_fallthru
    _
  // Predicated region
  $region6: #{mnist_cnn_forward.1} parent=0 // pred_check
    _
  $region7: #{mnist_cnn_forward.1} parent=0 // pred_check_branch
    %17 = sbr.rel (0) target = $region9
  $region8: #{mnist_cnn_forward.1} parent=0 // pred_region
    _
  $region9: #{mnist_cnn_forward.1} parent=0 // pred_fallthru
    _
  // Predicated region
  $region10: #{mnist_cnn_forward.1} parent=0 // pred_check
    _
  $region11: #{mnist_cnn_forward.1} parent=0 // pred_check_branch
    %19 = sbr.rel (0) target = $region13
  $region12: #{mnist_cnn_forward.1} parent=0 // pred_region
    _
  $region13: #{mnist_cnn_forward.1} parent=0 // pred_fallthru
    _
  // Predicated region
  $region14: #{mnist_cnn_forward.1} parent=0 // pred_check
    _
  $region15: #{mnist_cnn_forward.1} parent=0 // pred_check_branch
    %21 = sbr.rel (0) target = $region17
  $region16: #{mnist_cnn_forward.1} parent=0 // pred_region
    _
  $region17: #{mnist_cnn_forward.1} parent=0 // pred_fallthru
    _
  // Predicated region
  $region18: #{mnist_cnn_forward.1} parent=0 // pred_check
    _
  $region19: #{mnist_cnn_forward.1} parent=0 // pred_check_branch
    %23 = sbr.rel (0) target = $region21
  $region20: #{mnist_cnn_forward.1} parent=0 // pred_region
    _
  $region21: #{mnist_cnn_forward.1} parent=0 // pred_fallthru
    _
  // Predicated region
  $region22: #{mnist_cnn_forward.1} parent=0 // pred_check
    _
  $region23: #{mnist_cnn_forward.1} parent=0 // pred_check_branch
    %25 = sbr.rel (0) target = $region25
  $region24: #{mnist_cnn_forward.1} parent=0 // pred_region
    _
  $region25: #{mnist_cnn_forward.1} parent=0 // pred_fallthru
    _
  // Predicated region
  $region26: #{mnist_cnn_forward.1} parent=0 // pred_check
    _
  $region27: #{mnist_cnn_forward.1} parent=0 // pred_check_branch
    %27 = sbr.rel (0) target = $region29
  $region28: #{mnist_cnn_forward.1} parent=0 // pred_region
    _
  $region29: #{mnist_cnn_forward.1} parent=0 // pred_fallthru
    _
  // Predicated region
  $region30: #{mnist_cnn_forward.1} parent=0 // pred_check
    _
  $region31: #{mnist_cnn_forward.1} parent=0 // pred_check_branch
    %29 = sbr.rel (0) target = $region33
  $region32: #{mnist_cnn_forward.1} parent=0 // pred_region
    _
  $region33: #{mnist_cnn_forward.1} parent=0 // pred_fallthru
    _
  // Predicated region
  $region34: #{mnist_cnn_forward.1} parent=0 // pred_check
    _
  $region35: #{mnist_cnn_forward.1} parent=0 // pred_check_branch
    %31 = sbr.rel (0) target = $region37
  $region36: #{mnist_cnn_forward.1} parent=0 // pred_region
    _
  $region37: #{mnist_cnn_forward.1} parent=0 // pred_fallthru
    _
  %v33 = vld [vmem:[%s0] sm:$0xff]
  %v34 = vld [vmem:[%s0 + $0x8] sm:$0xff]
  %v35 = vld [vmem:[%s0 + $0x10] sm:$0xff]
  %v36 = vld [vmem:[%s0 + $0x18] sm:$0xff]
  %v37 = vld [vmem:[%s0 + $0x20] sm:$0xff]
  %v38 = vld [vmem:[%s0 + $0x28] sm:$0xff]
  %v39 = vld [vmem:[%s0 + $0x30] sm:$0xff]
  %v40 = vld [vmem:[%s0 + $0x38] sm:$0xff]
  %v41 = vld [vmem:[%s0 + $0x40] sm:$0xff]
  %v42 = vld [vmem:[%s0 + $0x48] sm:$0xff]
  %v43 = vld [vmem:[%s0 + $0x50] sm:$0xff]
  %v44 = vld [vmem:[%s0 + $0x58] sm:$0xff]
  %v45 = vld [vmem:[%s0 + $0x60] sm:$0xff]
  %v46 = vld [vmem:[%s0 + $0x68] sm:$0xff]
  %v47 = vld [vmem:[%s0 + $0x70] sm:$0xff]
  %v48 = vld [vmem:[%s0 + $0x78] sm:$0xff]
  %v49 = vld [vmem:[%s0 + $0x80] sm:$0xff]
  %v50 = vld [vmem:[%s0 + $0x88] sm:$0xff]
  %v51 = vld [vmem:[%s0 + $0x90] sm:$0xff]
  %v52 = vld [vmem:[%s0 + $0x98] sm:$0xff]
  %v53 = vld [vmem:[%s0 + $0xa0] sm:$0xff]
  %v54 = vld [vmem:[%s0 + $0xa8] sm:$0xff]
  %v55 = vld [vmem:[%s0 + $0xb0] sm:$0xff]
  %v56 = vld [vmem:[%s0 + $0xb8] sm:$0xff]
  %v57 = vld [vmem:[%s0 + $0xc0] sm:$0xff]
  %v58 = vld [vmem:[%s0 + $0xc8] sm:$0xff]
  %v59 = vld [vmem:[%s0 + $0xd0] sm:$0xff]
  %v60 = vld [vmem:[%s0 + $0xd8] sm:$0xff]
  %v61 = vld [vmem:[%s0 + $0xe0] sm:$0xff]
  %v62 = vld [vmem:[%s0 + $0xe8] sm:$0xff]
  %v63 = vld [vmem:[%s0 + $0xf0] sm:$0xff]
  %v64 = vld [vmem:[%s0 + $0xf8] sm:$0xff]
  %v65 = vld [vmem:[%s0 + $0x100] sm:$0xff]
  %v66 = vld [vmem:[%s0 + $0x108] sm:$0xff]
  %v67 = vld [vmem:[%s0 + $0x110] sm:$0xff]
  %v68 = vld [vmem:[%s0 + $0x118] sm:$0xff]
  %v69 = vld [vmem:[%s0 + $0x120] sm:$0xff]
  %v70 = vld [vmem:[%s0 + $0x128] sm:$0xff]
  %v71 = vld [vmem:[%s0 + $0x130] sm:$0xff]
  %v72 = vld [vmem:[%s0 + $0x138] sm:$0xff]
  %v73 = vld [vmem:[%s0 + $0x140] sm:$0xff]
  %v74 = vld [vmem:[%s0 + $0x148] sm:$0xff]
  %v75 = vld [vmem:[%s0 + $0x150] sm:$0xff]
  %v76 = vld [vmem:[%s0 + $0x158] sm:$0xff]
  %v77 = vld [vmem:[%s0 + $0x160] sm:$0xff]
  %v78 = vld [vmem:[%s0 + $0x168] sm:$0xff]
  %v79 = vld [vmem:[%s0 + $0x170] sm:$0xff]
  %v80 = vld [vmem:[%s0 + $0x178] sm:$0xff]
  %v81 = vpack.c.bf16 %v35, %v33
  %v82 = vpack.c.bf16 %v36, %v34
  %v83 = vpack.c.bf16 %v39, %v37
  %v84 = vpack.c.bf16 %v40, %v38
  %v85 = vpack.c.bf16 %v43, %v41
  %v86 = vpack.c.bf16 %v44, %v42
  %v87 = vpack.c.bf16 %v47, %v45
  %v88 = vpack.c.bf16 %v48, %v46
  %v89 = vpack.c.bf16 %v51, %v49
  %v90 = vpack.c.bf16 %v52, %v50
  %v91 = vpack.c.bf16 %v55, %v53
  %v92 = vpack.c.bf16 %v56, %v54
  %v93 = vpack.c.bf16 %v59, %v57
  %v94 = vpack.c.bf16 %v60, %v58
  %v95 = vpack.c.bf16 %v63, %v61
  %v96 = vpack.c.bf16 %v64, %v62
  %v97 = vpack.c.bf16 %v67, %v65
  %v98 = vpack.c.bf16 %v68, %v66
  %v99 = vpack.c.bf16 %v71, %v69
  %v100 = vpack.c.bf16 %v72, %v70
  %v101 = vpack.c.bf16 %v75, %v73
  %v102 = vpack.c.bf16 %v76, %v74
  %v103 = vpack.c.bf16 %v79, %v77
  %v104 = vpack.c.bf16 %v80, %v78
  %v105 = vld [vmem:[%s1] sm:$0xf]
  %v106 = vld [vmem:[%s1 + $0x4] sm:$0xf]
  %v107 = vld [vmem:[%s1 + $0x8] sm:$0xf]
  %v108 = vld [vmem:[%s1 + $0xc] sm:$0xf]
  %v109 = vld [vmem:[%s1 + $0x10] sm:$0xf]
  %v110 = vld [vmem:[%s1 + $0x14] sm:$0xf]
  %v111 = vld [vmem:[%s1 + $0x18] sm:$0xf]
  %v112 = vld [vmem:[%s1 + $0x1c] sm:$0xf]
  %v113 = vld [vmem:[%s1 + $0x20] sm:$0xf]
  %v114 = vld [vmem:[%s1 + $0x24] sm:$0xf]
  %v115 = vld [vmem:[%s1 + $0x28] sm:$0xf]
  %v116 = vld [vmem:[%s1 + $0x2c] sm:$0xf]
  %v117 = vld [vmem:[%s1 + $0x30] sm:$0xf]
  %v118 = vld [vmem:[%s1 + $0x34] sm:$0xf]
  %v119 = vld [vmem:[%s1 + $0x38] sm:$0xf]
  %v120 = vld [vmem:[%s1 + $0x3c] sm:$0xf]
  %v121 = vld [vmem:[%s1 + $0x40] sm:$0xf]
  %v122 = vld [vmem:[%s1 + $0x44] sm:$0x3]
  %v123 = vld [vmem:[%s2] sm:$0x1]
  %v125 = vlaneseq
  %v126 = vshrl.u32 %v125, 7
  %v127 = vsub.s32 0, %v126
  %v128 = vrot.slane %v123, %v127
  %v148 = vunpack.c.l.b16 %v105
  %v149 = vunpack.c.l.b16 %v106
  %v150 = vunpack.c.l.b16 %v107
  %v151 = vunpack.c.l.b16 %v108
  %v152 = vunpack.c.l.b16 %v109
  %v153 = vunpack.c.l.b16 %v110
  %v154 = vunpack.c.l.b16 %v111
  %v155 = vunpack.c.l.b16 %v112
  %v156 = vunpack.c.l.b16 %v113
  %v157 = vunpack.c.l.b16 %v114
  %v158 = vunpack.c.l.b16 %v115
  %v159 = vunpack.c.l.b16 %v116
  %v160 = vunpack.c.l.b16 %v117
  %v161 = vunpack.c.l.b16 %v118
  %v162 = vunpack.c.l.b16 %v119
  %v163 = vunpack.c.l.b16 %v120
  %v164 = vunpack.c.l.b16 %v121
  %v165 = vunpack.c.l.b16 %v122
  %v166 = vpack.c.b16 %v149, %v148
  %v167 = vpack.c.b16 %v151, %v150
  %v168 = vpack.c.b16 %v153, %v152
  %v169 = vpack.c.b16 %v155, %v154
  %v170 = vpack.c.b16 %v157, %v156
  %v171 = vpack.c.b16 %v159, %v158
  %v172 = vpack.c.b16 %v161, %v160
  %v173 = vpack.c.b16 %v163, %v162
  %v174 = vpack.c.b16 %v165, %v164
  %vm183 = vcmask 97280
  %v185 = vsel %vm183, %v82, 0
  %v188 = vsel %vm183, %v84, 0
  %v191 = vsel %vm183, %v86, 0
  %v194 = vsel %vm183, %v88, 0
  %v197 = vsel %vm183, %v90, 0
  %v200 = vsel %vm183, %v92, 0
  %v203 = vsel %vm183, %v94, 0
  %v206 = vsel %vm183, %v96, 0
  %v209 = vsel %vm183, %v98, 0
  %v212 = vsel %vm183, %v100, 0
  %v215 = vsel %vm183, %v102, 0
  %v218 = vsel %vm183, %v104, 0
  %vm220 = vcmask 1045504
  %v222 = vsel %vm220, %v174, 0
  %224 = vmatprep.subr.bf16.mxu0 0
  %225 = vmatpush1.bf16.msra.mxu0 %v166
  %226 = vmatprep.subr.bf16.mxu0 0
  %227 = vmatpush1.bf16.msra.mxu0 %v167
  %228 = vmatprep.subr.bf16.mxu0 0
  %229 = vmatpush1.bf16.msra.mxu0 %v168
  %230 = vmatprep.subr.bf16.mxu0 0
  %231 = vmatpush1.bf16.msra.mxu0 %v169
  %232 = vmatprep.subr.bf16.mxu0 0
  %233 = vmatpush1.bf16.msra.mxu0 %v170
  %234 = vmatprep.subr.bf16.mxu0 0
  %235 = vmatpush1.bf16.msra.mxu0 %v171
  %236 = vmatprep.subr.bf16.mxu0 0
  %237 = vmatpush1.bf16.msra.mxu0 %v172
  %238 = vmatprep.subr.bf16.mxu0 0
  %239 = vmatpush1.bf16.msra.mxu0 %v173
  %240 = vmatprep.subr.bf16.mxu0 0
  %241 = vmatpush1.bf16.msra.mxu0 %v222
  %242 = vmatprep.subr.bf16.mxu0 0
  %243 = vmatpush1.bf16.msra.mxu0 0
  %244 = vmatprep.subr.bf16.mxu0 0
  %245 = vmatpush1.bf16.msra.mxu0 0
  %246 = vmatprep.subr.bf16.mxu0 0
  %247 = vmatpush1.bf16.msra.mxu0 0
  %248 = vmatprep.subr.bf16.mxu0 0
  %249 = vmatpush1.bf16.msra.mxu0 0
  %250 = vmatprep.subr.bf16.mxu0 0
  %251 = vmatpush1.bf16.msra.mxu0 0
  %252 = vmatprep.subr.bf16.mxu0 0
  %253 = vmatpush1.bf16.msra.mxu0 0
  %254 = vmatprep.subr.bf16.mxu0 0
  %255 = vmatpush1.bf16.msra.mxu0 0
  %256 = vmatprep.mubr.bf16.mxu0 %v185
  %257 = vmatmul.mubr.bf16.gmra.mrb[0].mxu0 %v81
  %v258 = vpop.f32.mrb[0].mxu0
  %v259 = vadd.f32 %v128, %v258
  %v260 = vpop.f32.mrb[0].mxu0
  %v261 = vpop.f32.mrb[0].mxu0
  %v262 = vadd.f32 %v128, %v261
  %v263 = vpop.f32.mrb[0].mxu0
  %264 = vmatprep.mubr.bf16.mxu0 %v188
  %265 = vmatmul.mubr.bf16.gmra.mrb[0].mxu0 %v83
  %v266 = vpop.f32.mrb[0].mxu0
  %v267 = vadd.f32 %v128, %v266
  %v268 = vpop.f32.mrb[0].mxu0
  %v269 = vpop.f32.mrb[0].mxu0
  %v270 = vadd.f32 %v128, %v269
  %v271 = vpop.f32.mrb[0].mxu0
  %272 = vmatprep.mubr.bf16.mxu0 %v191
  %273 = vmatmul.mubr.bf16.gmra.mrb[0].mxu0 %v85
  %v274 = vpop.f32.mrb[0].mxu0
  %v275 = vadd.f32 %v128, %v274
  %v276 = vpop.f32.mrb[0].mxu0
  %v277 = vpop.f32.mrb[0].mxu0
  %v278 = vadd.f32 %v128, %v277
  %v279 = vpop.f32.mrb[0].mxu0
  %280 = vmatprep.mubr.bf16.mxu0 %v194
  %281 = vmatmul.mubr.bf16.gmra.mrb[0].mxu0 %v87
  %v282 = vpop.f32.mrb[0].mxu0
  %v283 = vadd.f32 %v128, %v282
  %v284 = vpop.f32.mrb[0].mxu0
  %v285 = vpop.f32.mrb[0].mxu0
  %v286 = vadd.f32 %v128, %v285
  %v287 = vpop.f32.mrb[0].mxu0
  %288 = vmatprep.mubr.bf16.mxu0 %v197
  %289 = vmatmul.mubr.bf16.gmra.mrb[0].mxu0 %v89
  %v290 = vpop.f32.mrb[0].mxu0
  %v291 = vadd.f32 %v128, %v290
  %v292 = vpop.f32.mrb[0].mxu0
  %v293 = vpop.f32.mrb[0].mxu0
  %v294 = vadd.f32 %v128, %v293
  %v295 = vpop.f32.mrb[0].mxu0
  %296 = vmatprep.mubr.bf16.mxu0 %v200
  %297 = vmatmul.mubr.bf16.gmra.mrb[0].mxu0 %v91
  %v298 = vpop.f32.mrb[0].mxu0
  %v299 = vadd.f32 %v128, %v298
  %v300 = vpop.f32.mrb[0].mxu0
  %v301 = vpop.f32.mrb[0].mxu0
  %v302 = vadd.f32 %v128, %v301
  %v303 = vpop.f32.mrb[0].mxu0
  %304 = vmatprep.mubr.bf16.mxu0 %v203
  %305 = vmatmul.mubr.bf16.gmra.mrb[0].mxu0 %v93
  %v306 = vpop.f32.mrb[0].mxu0
  %v307 = vadd.f32 %v128, %v306
  %v308 = vpop.f32.mrb[0].mxu0
  %v309 = vpop.f32.mrb[0].mxu0
  %v310 = vadd.f32 %v128, %v309
  %v311 = vpop.f32.mrb[0].mxu0
  %312 = vmatprep.mubr.bf16.mxu0 %v206
  %313 = vmatmul.mubr.bf16.gmra.mrb[0].mxu0 %v95
  %v314 = vpop.f32.mrb[0].mxu0
  %v315 = vadd.f32 %v128, %v314
  %v316 = vpop.f32.mrb[0].mxu0
  %v317 = vpop.f32.mrb[0].mxu0
  %v318 = vadd.f32 %v128, %v317
  %v319 = vpop.f32.mrb[0].mxu0
  %320 = vmatprep.mubr.bf16.mxu0 %v209
  %321 = vmatmul.mubr.bf16.gmra.mrb[0].mxu0 %v97
  %v322 = vpop.f32.mrb[0].mxu0
  %v323 = vadd.f32 %v128, %v322
  %v324 = vpop.f32.mrb[0].mxu0
  %v325 = vpop.f32.mrb[0].mxu0
  %v326 = vadd.f32 %v128, %v325
  %v327 = vpop.f32.mrb[0].mxu0
  %328 = vmatprep.mubr.bf16.mxu0 %v212
  %329 = vmatmul.mubr.bf16.gmra.mrb[0].mxu0 %v99
  %v330 = vpop.f32.mrb[0].mxu0
  %v331 = vadd.f32 %v128, %v330
  %v332 = vpop.f32.mrb[0].mxu0
  %v333 = vpop.f32.mrb[0].mxu0
  %v334 = vadd.f32 %v128, %v333
  %v335 = vpop.f32.mrb[0].mxu0
  %336 = vmatprep.mubr.bf16.mxu0 %v215
  %337 = vmatmul.mubr.bf16.gmra.mrb[0].mxu0 %v101
  %v338 = vpop.f32.mrb[0].mxu0
  %v339 = vadd.f32 %v128, %v338
  %v340 = vpop.f32.mrb[0].mxu0
  %v341 = vpop.f32.mrb[0].mxu0
  %v342 = vadd.f32 %v128, %v341
  %v343 = vpop.f32.mrb[0].mxu0
  %344 = vmatprep.mubr.bf16.mxu0 %v218
  %345 = vmatmul.mubr.bf16.gmra.mrb[0].mxu0 %v103
  %v346 = vpop.f32.mrb[0].mxu0
  %v347 = vadd.f32 %v128, %v346
  %v348 = vpop.f32.mrb[0].mxu0
  %v349 = vpop.f32.mrb[0].mxu0
  %v350 = vadd.f32 %v128, %v349
  %v351 = vpop.f32.mrb[0].mxu0
  %352 = vdwg.mxu0
  %v353 = vmax.f32 %v259, 0.0
  %v354 = vmax.f32 %v262, 0.0
  %v355 = vmax.f32 %v267, 0.0
  %v356 = vmax.f32 %v270, 0.0
  %v357 = vmax.f32 %v275, 0.0
  %v358 = vmax.f32 %v278, 0.0
  %v359 = vmax.f32 %v283, 0.0
  %v360 = vmax.f32 %v286, 0.0
  %v361 = vmax.f32 %v291, 0.0
  %v362 = vmax.f32 %v294, 0.0
  %v363 = vmax.f32 %v299, 0.0
  %v364 = vmax.f32 %v302, 0.0
  %v365 = vmax.f32 %v307, 0.0
  %v366 = vmax.f32 %v310, 0.0
  %v367 = vmax.f32 %v315, 0.0
  %v368 = vmax.f32 %v318, 0.0
  %v369 = vmax.f32 %v323, 0.0
  %v370 = vmax.f32 %v326, 0.0
  %v371 = vmax.f32 %v331, 0.0
  %v372 = vmax.f32 %v334, 0.0
  %v373 = vmax.f32 %v339, 0.0
  %v374 = vmax.f32 %v342, 0.0
  %v375 = vmax.f32 %v347, 0.0
  %v376 = vmax.f32 %v350, 0.0
  %v377 = vmax.f32 %v353, %v365
  %v378 = vmax.f32 %v354, %v366
  %v379 = vmax.f32 %v355, %v367
  %v380 = vmax.f32 %v356, %v368
  %v381 = vmax.f32 %v357, %v369
  %v382 = vmax.f32 %v358, %v370
  %v383 = vmax.f32 %v359, %v371
  %v384 = vmax.f32 %v360, %v372
  %v385 = vmax.f32 %v361, %v373
  %v386 = vmax.f32 %v362, %v374
  %v387 = vmax.f32 %v363, %v375
  %v388 = vmax.f32 %v364, %v376
  %401 = vrot.lane.b32.xlu0 %v377, 80
  %v402 = vpop.permute.xlu0 %401
  %403 = vrot.lane.b32.xlu0 %v378, 80
  %v404 = vpop.permute.xlu0 %403
  %405 = vrot.lane.b32.xlu0 %v379, 80
  %v406 = vpop.permute.xlu0 %405
  %407 = vrot.lane.b32.xlu0 %v380, 80
  %v408 = vpop.permute.xlu0 %407
  %409 = vrot.lane.b32.xlu0 %v381, 80
  %v410 = vpop.permute.xlu0 %409
  %411 = vrot.lane.b32.xlu0 %v382, 80
  %v412 = vpop.permute.xlu0 %411
  %413 = vrot.lane.b32.xlu0 %v383, 80
  %v414 = vpop.permute.xlu0 %413
  %415 = vrot.lane.b32.xlu0 %v384, 80
  %v416 = vpop.permute.xlu0 %415
  %417 = vrot.lane.b32.xlu0 %v385, 80
  %v418 = vpop.permute.xlu0 %417
  %419 = vrot.lane.b32.xlu0 %v386, 80
  %v420 = vpop.permute.xlu0 %419
  %421 = vrot.lane.b32.xlu0 %v387, 80
  %v422 = vpop.permute.xlu0 %421
  %423 = vrot.lane.b32.xlu0 %v388, 80
  %v424 = vpop.permute.xlu0 %423
  %v437 = vmax.f32 %v377, %v402
  %v438 = vmax.f32 %v378, %v404
  %v439 = vmax.f32 %v379, %v406
  %v440 = vmax.f32 %v380, %v408
  %v441 = vmax.f32 %v381, %v410
  %v442 = vmax.f32 %v382, %v412
  %v443 = vmax.f32 %v383, %v414
  %v444 = vmax.f32 %v384, %v416
  %v445 = vmax.f32 %v385, %v418
  %v446 = vmax.f32 %v386, %v420
  %v447 = vmax.f32 %v387, %v422
  %v448 = vmax.f32 %v388, %v424
  %v449 = vpack.c.bf16 %v438, %v437
  %v450 = vpack.c.bf16 %v440, %v439
  %v451 = vpack.c.bf16 %v442, %v441
  %v452 = vpack.c.bf16 %v444, %v443
  %v453 = vpack.c.bf16 %v446, %v445
  %v454 = vpack.c.bf16 %v448, %v447
  %v461 = vunpack.c.l.b16 %v449
  %v462 = vunpack.c.h.b16 %v449
  %v463 = vunpack.c.l.b16 %v450
  %v464 = vunpack.c.h.b16 %v450
  %v465 = vunpack.c.l.b16 %v451
  %v466 = vunpack.c.h.b16 %v451
  %v467 = vunpack.c.l.b16 %v452
  %v468 = vunpack.c.h.b16 %v452
  %v469 = vunpack.c.l.b16 %v453
  %v470 = vunpack.c.h.b16 %v453
  %v471 = vunpack.c.l.b16 %v454
  %v472 = vunpack.c.h.b16 %v454
  %v473 = vpack.c.b16 %v461, %v461
  %v474 = vpack.c.b16 %v462, %v462
  %v475 = vpack.c.b16 %v463, %v463
  %v476 = vpack.c.b16 %v464, %v464
  %v477 = vpack.c.b16 %v467, %v467
  %v478 = vpack.c.b16 %v468, %v468
  %v479 = vpack.c.b16 %v469, %v469
  %v480 = vpack.c.b16 %v470, %v470
  %481 = vrot.lane.b32.xlu0 %v477, 48
  %v482 = vpop.permute.xlu0 %481
  %483 = vrot.lane.b32.xlu0 %v478, 48
  %v484 = vpop.permute.xlu0 %483
  %485 = vrot.lane.b32.xlu0 %v479, 48
  %v486 = vpop.permute.xlu0 %485
  %487 = vrot.lane.b32.xlu0 %v480, 48
  %v488 = vpop.permute.xlu0 %487
  %v489 = vpack.c.b16 %v465, %v465
  %490 = vrot.lane.b32.xlu0 %v474, 96
  %v491 = vpop.permute.xlu0 %490
  %492 = vrot.lane.b32.xlu0 %v475, 96
  %v493 = vpop.permute.xlu0 %492
  %494 = vrot.lane.b32.xlu0 %v476, 96
  %v495 = vpop.permute.xlu0 %494
  %496 = vrot.lane.b32.xlu0 %v489, 96
  %v497 = vpop.permute.xlu0 %496
  %v498 = vpack.c.b16 %v471, %v471
  %499 = vrot.lane.b32.xlu0 %v478, 16
  %v500 = vpop.permute.xlu0 %499
  %501 = vrot.lane.b32.xlu0 %v479, 16
  %v502 = vpop.permute.xlu0 %501
  %503 = vrot.lane.b32.xlu0 %v480, 16
  %v504 = vpop.permute.xlu0 %503
  %505 = vrot.lane.b32.xlu0 %v498, 16
  %v506 = vpop.permute.xlu0 %505
  %v507 = vpack.c.b16 %v466, %v466
  %508 = vrot.lane.b32.xlu0 %v475, 64
  %v509 = vpop.permute.xlu0 %508
  %510 = vrot.lane.b32.xlu0 %v476, 64
  %v511 = vpop.permute.xlu0 %510
  %512 = vrot.lane.b32.xlu0 %v489, 64
  %v513 = vpop.permute.xlu0 %512
  %514 = vrot.lane.b32.xlu0 %v507, 64
  %v515 = vpop.permute.xlu0 %514
  %vm516 = vcmask 392192
  %v519 = vsel %vm516, %v473, %v482
  %v522 = vsel %vm516, %v474, %v484
  %v525 = vsel %vm516, %v475, %v486
  %v528 = vsel %vm516, %v476, %v488
  %vm529 = vcmask 785408
  %v531 = vsel %vm529, %v519, %v491
  %v533 = vsel %vm529, %v522, %v493
  %v535 = vsel %vm529, %v525, %v495
  %v537 = vsel %vm529, %v528, %v497
  %vm538 = vcmask 130048
  %v540 = vsel %vm538, %v491, %v500
  %v542 = vsel %vm538, %v493, %v502
  %v544 = vsel %vm538, %v495, %v504
  %v546 = vsel %vm538, %v497, %v506
  %vm547 = vcmask 523264
  %v549 = vsel %vm547, %v540, %v509
  %v551 = vsel %vm547, %v542, %v511
  %v553 = vsel %vm547, %v544, %v513
  %v555 = vsel %vm547, %v546, %v515
  %v564 = vunpack.c.l.b16 %v531
  %v565 = vunpack.c.l.b16 %v549
  %v566 = vunpack.c.l.b16 %v533
  %v567 = vunpack.c.l.b16 %v551
  %v568 = vunpack.c.l.b16 %v535
  %v569 = vunpack.c.l.b16 %v553
  %v570 = vunpack.c.l.b16 %v537
  %v571 = vunpack.c.l.b16 %v555
  %v572 = vld [vmem:[%s3] sm:$0xf]
  %v573 = vld [vmem:[%s3 + $0x4] sm:$0xf]
  %v574 = vld [vmem:[%s3 + $0x8] sm:$0xf]
  %v575 = vld [vmem:[%s3 + $0xc] sm:$0xf]
  %v576 = vld [vmem:[%s3 + $0x10] sm:$0xf]
  %v577 = vld [vmem:[%s3 + $0x14] sm:$0xf]
  %v578 = vld [vmem:[%s3 + $0x18] sm:$0xf]
  %v579 = vld [vmem:[%s3 + $0x1c] sm:$0xf]
  %v580 = vld [vmem:[%s3 + $0x20] sm:$0xf]
  %v581 = vld [vmem:[%s3 + $0x24] sm:$0xf]
  %v582 = vld [vmem:[%s3 + $0x28] sm:$0xf]
  %v583 = vld [vmem:[%s3 + $0x2c] sm:$0xf]
  %v584 = vld [vmem:[%s3 + $0x30] sm:$0xf]
  %v585 = vld [vmem:[%s3 + $0x34] sm:$0xf]
  %v586 = vld [vmem:[%s3 + $0x38] sm:$0xf]
  %v587 = vld [vmem:[%s3 + $0x3c] sm:$0xf]
  %v588 = vld [vmem:[%s3 + $0x40] sm:$0xf]
  %v589 = vld [vmem:[%s3 + $0x44] sm:$0xf]
  %v590 = vld [vmem:[%s3 + $0x48] sm:$0xf]
  %v591 = vld [vmem:[%s3 + $0x4c] sm:$0xf]
  %v592 = vld [vmem:[%s3 + $0x50] sm:$0xf]
  %v593 = vld [vmem:[%s3 + $0x54] sm:$0xf]
  %v594 = vld [vmem:[%s3 + $0x58] sm:$0xf]
  %v595 = vld [vmem:[%s3 + $0x5c] sm:$0xf]
  %v596 = vld [vmem:[%s3 + $0x60] sm:$0xf]
  %v597 = vld [vmem:[%s3 + $0x64] sm:$0xf]
  %v598 = vld [vmem:[%s3 + $0x68] sm:$0xf]
  %v599 = vld [vmem:[%s3 + $0x6c] sm:$0xf]
  %v600 = vld [vmem:[%s3 + $0x70] sm:$0xf]
  %v601 = vld [vmem:[%s3 + $0x74] sm:$0xf]
  %v602 = vld [vmem:[%s4] sm:$0x1]
  %v604 = vlaneseq
  %v605 = vshrl.u32 %v604, 7
  %v606 = vsub.s32 0, %v605
  %v607 = vrot.slane %v602, %v606
  %v609 = vpack.c.b16 %v566, %v564
  %v610 = vpack.c.b16 %v567, %v565
  %v611 = vpack.c.b16 %v570, %v568
  %v612 = vpack.c.b16 %v571, %v569
  %v645 = vunpack.c.l.b16 %v572
  %v646 = vunpack.c.l.b16 %v573
  %v647 = vunpack.c.l.b16 %v574
  %v648 = vunpack.c.l.b16 %v575
  %v649 = vunpack.c.l.b16 %v576
  %v650 = vunpack.c.l.b16 %v577
  %v651 = vunpack.c.l.b16 %v578
  %v652 = vunpack.c.l.b16 %v579
  %v653 = vunpack.c.l.b16 %v580
  %v654 = vunpack.c.l.b16 %v581
  %v655 = vunpack.c.l.b16 %v582
  %v656 = vunpack.c.l.b16 %v583
  %v657 = vunpack.c.l.b16 %v584
  %v658 = vunpack.c.l.b16 %v585
  %v659 = vunpack.c.l.b16 %v586
  %v660 = vunpack.c.l.b16 %v587
  %v661 = vunpack.c.l.b16 %v588
  %v662 = vunpack.c.l.b16 %v589
  %v663 = vunpack.c.l.b16 %v590
  %v664 = vunpack.c.l.b16 %v591
  %v665 = vunpack.c.l.b16 %v592
  %v666 = vunpack.c.l.b16 %v593
  %v667 = vunpack.c.l.b16 %v594
  %v668 = vunpack.c.l.b16 %v595
  %v669 = vunpack.c.l.b16 %v596
  %v670 = vunpack.c.l.b16 %v597
  %v671 = vunpack.c.l.b16 %v598
  %v672 = vunpack.c.l.b16 %v599
  %v673 = vunpack.c.l.b16 %v600
  %v674 = vunpack.c.l.b16 %v601
  %v675 = vpack.c.b16 %v646, %v645
  %v676 = vpack.c.b16 %v648, %v647
  %v677 = vpack.c.b16 %v650, %v649
  %v678 = vpack.c.b16 %v652, %v651
  %v679 = vpack.c.b16 %v654, %v653
  %v680 = vpack.c.b16 %v656, %v655
  %v681 = vpack.c.b16 %v658, %v657
  %v682 = vpack.c.b16 %v660, %v659
  %v683 = vpack.c.b16 %v662, %v661
  %v684 = vpack.c.b16 %v664, %v663
  %v685 = vpack.c.b16 %v666, %v665
  %v686 = vpack.c.b16 %v668, %v667
  %v687 = vpack.c.b16 %v670, %v669
  %v688 = vpack.c.b16 %v672, %v671
  %v689 = vpack.c.b16 %v674, %v673
  %vm705 = vcmask 916480
  %v707 = vsel %vm705, %v610, 0
  %v710 = vsel %vm705, %v612, 0
  %712 = vmatprep.subr.bf16.mxu0 0
  %713 = vmatpush1.bf16.msra.mxu0 %v675
  %714 = vmatprep.subr.bf16.mxu0 0
  %715 = vmatpush1.bf16.msra.mxu0 %v676
  %716 = vmatprep.subr.bf16.mxu0 0
  %717 = vmatpush1.bf16.msra.mxu0 %v677
  %718 = vmatprep.subr.bf16.mxu0 0
  %719 = vmatpush1.bf16.msra.mxu0 %v678
  %720 = vmatprep.subr.bf16.mxu0 0
  %721 = vmatpush1.bf16.msra.mxu0 %v679
  %722 = vmatprep.subr.bf16.mxu0 0
  %723 = vmatpush1.bf16.msra.mxu0 %v680
  %724 = vmatprep.subr.bf16.mxu0 0
  %725 = vmatpush1.bf16.msra.mxu0 %v681
  %726 = vmatprep.subr.bf16.mxu0 0
  %727 = vmatpush1.bf16.msra.mxu0 %v682
  %728 = vmatprep.subr.bf16.mxu0 0
  %729 = vmatpush1.bf16.msra.mxu0 %v683
  %730 = vmatprep.subr.bf16.mxu0 0
  %731 = vmatpush1.bf16.msra.mxu0 %v684
  %732 = vmatprep.subr.bf16.mxu0 0
  %733 = vmatpush1.bf16.msra.mxu0 %v685
  %734 = vmatprep.subr.bf16.mxu0 0
  %735 = vmatpush1.bf16.msra.mxu0 %v686
  %736 = vmatprep.subr.bf16.mxu0 0
  %737 = vmatpush1.bf16.msra.mxu0 %v687
  %738 = vmatprep.subr.bf16.mxu0 0
  %739 = vmatpush1.bf16.msra.mxu0 %v688
  %740 = vmatprep.subr.bf16.mxu0 0
  %741 = vmatpush1.bf16.msra.mxu0 %v689
  %742 = vmatprep.subr.bf16.mxu0 0
  %743 = vmatpush1.bf16.msra.mxu0 0
  %744 = vmatprep.mubr.bf16.mxu0 %v707
  %745 = vmatmul.mubr.bf16.gmra.mrb[0].mxu0 %v609
  %v746 = vpop.f32.mrb[0].mxu0
  %v747 = vadd.f32 %v607, %v746
  %v748 = vpop.f32.mrb[0].mxu0
  %v749 = vpop.f32.mrb[0].mxu0
  %v750 = vadd.f32 %v607, %v749
  %v751 = vpop.f32.mrb[0].mxu0
  %752 = vmatprep.mubr.bf16.mxu0 %v710
  %753 = vmatmul.mubr.bf16.gmra.mrb[0].mxu0 %v611
  %v754 = vpop.f32.mrb[0].mxu0
  %v755 = vadd.f32 %v607, %v754
  %v756 = vpop.f32.mrb[0].mxu0
  %v757 = vpop.f32.mrb[0].mxu0
  %v758 = vadd.f32 %v607, %v757
  %v759 = vpop.f32.mrb[0].mxu0
  %760 = vdwg.mxu0
  %v761 = vmax.f32 %v747, 0.0
  %v762 = vmax.f32 %v750, 0.0
  %v763 = vmax.f32 %v755, 0.0
  %v764 = vmax.f32 %v758, 0.0
  %765 = vrot.lane.b32.xlu0 %v474, 48
  %v766 = vpop.permute.xlu0 %765
  %767 = vrot.lane.b32.xlu0 %v475, 48
  %v768 = vpop.permute.xlu0 %767
  %769 = vrot.lane.b32.xlu0 %v476, 48
  %v770 = vpop.permute.xlu0 %769
  %771 = vrot.lane.b32.xlu0 %v489, 48
  %v772 = vpop.permute.xlu0 %771
  %773 = vrot.lane.b32.xlu0 %v478, 96
  %v774 = vpop.permute.xlu0 %773
  %775 = vrot.lane.b32.xlu0 %v479, 96
  %v776 = vpop.permute.xlu0 %775
  %777 = vrot.lane.b32.xlu0 %v480, 96
  %v778 = vpop.permute.xlu0 %777
  %779 = vrot.lane.b32.xlu0 %v498, 96
  %v780 = vpop.permute.xlu0 %779
  %781 = vrot.lane.b32.xlu0 %v475, 16
  %v782 = vpop.permute.xlu0 %781
  %783 = vrot.lane.b32.xlu0 %v476, 16
  %v784 = vpop.permute.xlu0 %783
  %785 = vrot.lane.b32.xlu0 %v489, 16
  %v786 = vpop.permute.xlu0 %785
  %787 = vrot.lane.b32.xlu0 %v507, 16
  %v788 = vpop.permute.xlu0 %787
  %v789 = vpack.c.b16 %v472, %v472
  %790 = vrot.lane.b32.xlu0 %v479, 64
  %v791 = vpop.permute.xlu0 %790
  %792 = vrot.lane.b32.xlu0 %v480, 64
  %v793 = vpop.permute.xlu0 %792
  %794 = vrot.lane.b32.xlu0 %v498, 64
  %v795 = vpop.permute.xlu0 %794
  %796 = vrot.lane.b32.xlu0 %v789, 64
  %v797 = vpop.permute.xlu0 %796
  %v800 = vsel %vm516, %v477, %v766
  %v803 = vsel %vm516, %v478, %v768
  %v806 = vsel %vm516, %v479, %v770
  %v809 = vsel %vm516, %v480, %v772
  %v811 = vsel %vm529, %v800, %v774
  %v813 = vsel %vm529, %v803, %v776
  %v815 = vsel %vm529, %v806, %v778
  %v817 = vsel %vm529, %v809, %v780
  %v819 = vsel %vm538, %v774, %v782
  %v821 = vsel %vm538, %v776, %v784
  %v823 = vsel %vm538, %v778, %v786
  %v825 = vsel %vm538, %v780, %v788
  %v827 = vsel %vm547, %v819, %v791
  %v829 = vsel %vm547, %v821, %v793
  %v831 = vsel %vm547, %v823, %v795
  %v833 = vsel %vm547, %v825, %v797
  %v842 = vunpack.c.l.b16 %v811
  %v843 = vunpack.c.l.b16 %v827
  %v844 = vunpack.c.l.b16 %v813
  %v845 = vunpack.c.l.b16 %v829
  %v846 = vunpack.c.l.b16 %v815
  %v847 = vunpack.c.l.b16 %v831
  %v848 = vunpack.c.l.b16 %v817
  %v849 = vunpack.c.l.b16 %v833
  %v850 = vpack.c.b16 %v844, %v842
  %v851 = vpack.c.b16 %v845, %v843
  %v852 = vpack.c.b16 %v848, %v846
  %v853 = vpack.c.b16 %v849, %v847
  %v857 = vsel %vm705, %v851, 0
  %v860 = vsel %vm705, %v853, 0
  %862 = vmatprep.subr.bf16.mxu0 0
  %863 = vmatpush1.bf16.msra.mxu0 %v675
  %864 = vmatprep.subr.bf16.mxu0 0
  %865 = vmatpush1.bf16.msra.mxu0 %v676
  %866 = vmatprep.subr.bf16.mxu0 0
  %867 = vmatpush1.bf16.msra.mxu0 %v677
  %868 = vmatprep.subr.bf16.mxu0 0
  %869 = vmatpush1.bf16.msra.mxu0 %v678
  %870 = vmatprep.subr.bf16.mxu0 0
  %871 = vmatpush1.bf16.msra.mxu0 %v679
  %872 = vmatprep.subr.bf16.mxu0 0
  %873 = vmatpush1.bf16.msra.mxu0 %v680
  %874 = vmatprep.subr.bf16.mxu0 0
  %875 = vmatpush1.bf16.msra.mxu0 %v681
  %876 = vmatprep.subr.bf16.mxu0 0
  %877 = vmatpush1.bf16.msra.mxu0 %v682
  %878 = vmatprep.subr.bf16.mxu0 0
  %879 = vmatpush1.bf16.msra.mxu0 %v683
  %880 = vmatprep.subr.bf16.mxu0 0
  %881 = vmatpush1.bf16.msra.mxu0 %v684
  %882 = vmatprep.subr.bf16.mxu0 0
  %883 = vmatpush1.bf16.msra.mxu0 %v685
  %884 = vmatprep.subr.bf16.mxu0 0
  %885 = vmatpush1.bf16.msra.mxu0 %v686
  %886 = vmatprep.subr.bf16.mxu0 0
  %887 = vmatpush1.bf16.msra.mxu0 %v687
  %888 = vmatprep.subr.bf16.mxu0 0
  %889 = vmatpush1.bf16.msra.mxu0 %v688
  %890 = vmatprep.subr.bf16.mxu0 0
  %891 = vmatpush1.bf16.msra.mxu0 %v689
  %892 = vmatprep.subr.bf16.mxu0 0
  %893 = vmatpush1.bf16.msra.mxu0 0
  %894 = vmatprep.mubr.bf16.mxu0 %v857
  %895 = vmatmul.mubr.bf16.gmra.mrb[0].mxu0 %v850
  %v896 = vpop.f32.mrb[0].mxu0
  %v897 = vadd.f32 %v607, %v896
  %v898 = vpop.f32.mrb[0].mxu0
  %v899 = vpop.f32.mrb[0].mxu0
  %v900 = vadd.f32 %v607, %v899
  %v901 = vpop.f32.mrb[0].mxu0
  %902 = vmatprep.mubr.bf16.mxu0 %v860
  %903 = vmatmul.mubr.bf16.gmra.mrb[0].mxu0 %v852
  %v904 = vpop.f32.mrb[0].mxu0
  %v905 = vadd.f32 %v607, %v904
  %v906 = vpop.f32.mrb[0].mxu0
  %v907 = vpop.f32.mrb[0].mxu0
  %v908 = vadd.f32 %v607, %v907
  %v909 = vpop.f32.mrb[0].mxu0
  %910 = vdwg.mxu0
  %v911 = vmax.f32 %v897, 0.0
  %v912 = vmax.f32 %v900, 0.0
  %v913 = vmax.f32 %v905, 0.0
  %v914 = vmax.f32 %v908, 0.0
  %v915 = vmax.f32 %v761, %v911
  %v916 = vmax.f32 %v762, %v912
  %v917 = vmax.f32 %v763, %v913
  %v918 = vmax.f32 %v764, %v914
  %923 = vrot.lane.b32.xlu0 %v915, 96
  %v924 = vpop.permute.xlu0 %923
  %925 = vrot.lane.b32.xlu0 %v916, 96
  %v926 = vpop.permute.xlu0 %925
  %927 = vrot.lane.b32.xlu0 %v917, 96
  %v928 = vpop.permute.xlu0 %927
  %929 = vrot.lane.b32.xlu0 %v918, 96
  %v930 = vpop.permute.xlu0 %929
  %v935 = vmax.f32 %v915, %v924
  %v936 = vmax.f32 %v916, %v926
  %v937 = vmax.f32 %v917, %v928
  %v938 = vmax.f32 %v918, %v930
  %v939 = vpack.c.bf16 %v936, %v935
  %v940 = vpack.c.bf16 %v938, %v937
  %v943 = vunpack.c.l.b16 %v939
  %v944 = vunpack.c.h.b16 %v939
  %v945 = vunpack.c.l.b16 %v940
  %v946 = vunpack.c.h.b16 %v940
  %v947 = vpack.c.b16 %v943, %v943
  %v948 = vpack.c.b16 %v944, %v944
  %949 = vrot.lane.b32.xlu0 %v948, 32
  %v950 = vpop.permute.xlu0 %949
  %v951 = vpack.c.b16 %v945, %v945
  %952 = vrot.lane.b32.xlu0 %v951, 64
  %v953 = vpop.permute.xlu0 %952
  %v954 = vpack.c.b16 %v946, %v946
  %955 = vrot.lane.b32.xlu0 %v954, 96
  %v956 = vpop.permute.xlu0 %955
  %vm957 = vcmask 261120
  %v960 = vsel %vm957, %v947, %v950
  %v962 = vsel %vm547, %v960, %v953
  %v964 = vsel %vm529, %v962, %v956
  %v966 = vld [vmem:[%s5] sm:$0xff]
  %v967 = vld [vmem:[%s5 + $0x8] sm:$0xff]
  %v968 = vld [vmem:[%s5 + $0x10] sm:$0xff]
  %v969 = vld [vmem:[%s5 + $0x18] sm:$0xff]
  %v970 = vld [vmem:[%s5 + $0x20] sm:$0xff]
  %v971 = vld [vmem:[%s5 + $0x28] sm:$0xff]
  %v972 = vld [vmem:[%s5 + $0x30] sm:$0xff]
  %v973 = vld [vmem:[%s5 + $0x38] sm:$0xff]
  %v974 = vld [vmem:[%s5 + $0x40] sm:$0xff]
  %v975 = vld [vmem:[%s5 + $0x48] sm:$0xff]
  %v976 = vld [vmem:[%s5 + $0x50] sm:$0xff]
  %v977 = vld [vmem:[%s5 + $0x58] sm:$0xff]
  %v978 = vld [vmem:[%s5 + $0x60] sm:$0xff]
  %v979 = vld [vmem:[%s5 + $0x68] sm:$0xff]
  %v980 = vld [vmem:[%s5 + $0x70] sm:$0xff]
  %v981 = vld [vmem:[%s5 + $0x78] sm:$0xff]
  %v982 = vld [vmem:[%s5 + $0x80] sm:$0xff]
  %v983 = vld [vmem:[%s5 + $0x88] sm:$0xff]
  %v984 = vld [vmem:[%s5 + $0x90] sm:$0xff]
  %v985 = vld [vmem:[%s5 + $0x98] sm:$0xff]
  %v986 = vld [vmem:[%s5 + $0xa0] sm:$0xff]
  %v987 = vld [vmem:[%s5 + $0xa8] sm:$0xff]
  %v988 = vld [vmem:[%s5 + $0xb0] sm:$0xff]
  %v989 = vld [vmem:[%s5 + $0xb8] sm:$0xff]
  %v990 = vld [vmem:[%s5 + $0xc0] sm:$0xff]
  %v991 = vld [vmem:[%s5 + $0xc8] sm:$0xff]
  %v992 = vld [vmem:[%s5 + $0xd0] sm:$0xff]
  %v993 = vld [vmem:[%s5 + $0xd8] sm:$0xff]
  %v994 = vld [vmem:[%s5 + $0xe0] sm:$0xff]
  %v995 = vld [vmem:[%s5 + $0xe8] sm:$0xff]
  %v996 = vld [vmem:[%s5 + $0xf0] sm:$0xff]
  %v997 = vld [vmem:[%s5 + $0xf8] sm:$0xff]
  %v998 = vld [vmem:[%s6] sm:$0xf]
  %v1000 = vlaneseq
  %v1001 = vshrl.u32 %v1000, 7
  %v1002 = vsub.s32 0, %v1001
  %v1003 = vrot.slane %v998, %v1002
  %v1004 = vlaneseq
  %v1005 = vshrl.u32 %v1004, 7
  %v1006 = vsub.s32 1, %v1005
  %v1007 = vrot.slane %v998, %v1006
  %v1008 = vlaneseq
  %v1009 = vshrl.u32 %v1008, 7
  %v1010 = vsub.s32 2, %v1009
  %v1011 = vrot.slane %v998, %v1010
  %v1012 = vlaneseq
  %v1013 = vshrl.u32 %v1012, 7
  %v1014 = vsub.s32 3, %v1013
  %v1015 = vrot.slane %v998, %v1014
  %v1052 = vunpack.c.l.b16 %v966
  %v1053 = vunpack.c.h.b16 %v966
  %v1054 = vunpack.c.l.b16 %v967
  %v1055 = vunpack.c.h.b16 %v967
  %v1056 = vunpack.c.l.b16 %v968
  %v1057 = vunpack.c.h.b16 %v968
  %v1058 = vunpack.c.l.b16 %v969
  %v1059 = vunpack.c.h.b16 %v969
  %v1060 = vunpack.c.l.b16 %v970
  %v1061 = vunpack.c.h.b16 %v970
  %v1062 = vunpack.c.l.b16 %v971
  %v1063 = vunpack.c.h.b16 %v971
  %v1064 = vunpack.c.l.b16 %v972
  %v1065 = vunpack.c.h.b16 %v972
  %v1066 = vunpack.c.l.b16 %v973
  %v1067 = vunpack.c.h.b16 %v973
  %v1068 = vunpack.c.l.b16 %v974
  %v1069 = vunpack.c.h.b16 %v974
  %v1070 = vunpack.c.l.b16 %v975
  %v1071 = vunpack.c.h.b16 %v975
  %v1072 = vunpack.c.l.b16 %v976
  %v1073 = vunpack.c.h.b16 %v976
  %v1074 = vunpack.c.l.b16 %v977
  %v1075 = vunpack.c.h.b16 %v977
  %v1076 = vunpack.c.l.b16 %v978
  %v1077 = vunpack.c.h.b16 %v978
  %v1078 = vunpack.c.l.b16 %v979
  %v1079 = vunpack.c.h.b16 %v979
  %v1080 = vunpack.c.l.b16 %v980
  %v1081 = vunpack.c.h.b16 %v980
  %v1082 = vunpack.c.l.b16 %v981
  %v1083 = vunpack.c.h.b16 %v981
  %v1084 = vunpack.c.l.b16 %v982
  %v1085 = vunpack.c.h.b16 %v982
  %v1086 = vunpack.c.l.b16 %v983
  %v1087 = vunpack.c.h.b16 %v983
  %v1088 = vunpack.c.l.b16 %v984
  %v1089 = vunpack.c.h.b16 %v984
  %v1090 = vunpack.c.l.b16 %v985
  %v1091 = vunpack.c.h.b16 %v985
  %v1092 = vunpack.c.l.b16 %v986
  %v1093 = vunpack.c.h.b16 %v986
  %v1094 = vunpack.c.l.b16 %v987
  %v1095 = vunpack.c.h.b16 %v987
  %v1096 = vunpack.c.l.b16 %v988
  %v1097 = vunpack.c.h.b16 %v988
  %v1098 = vunpack.c.l.b16 %v989
  %v1099 = vunpack.c.h.b16 %v989
  %v1100 = vunpack.c.l.b16 %v990
  %v1101 = vunpack.c.h.b16 %v990
  %v1102 = vunpack.c.l.b16 %v991
  %v1103 = vunpack.c.h.b16 %v991
  %v1104 = vunpack.c.l.b16 %v992
  %v1105 = vunpack.c.h.b16 %v992
  %v1106 = vunpack.c.l.b16 %v993
  %v1107 = vunpack.c.h.b16 %v993
  %v1108 = vunpack.c.l.b16 %v994
  %v1109 = vunpack.c.h.b16 %v994
  %v1110 = vunpack.c.l.b16 %v995
  %v1111 = vunpack.c.h.b16 %v995
  %v1112 = vunpack.c.l.b16 %v996
  %v1113 = vunpack.c.h.b16 %v996
  %v1114 = vunpack.c.l.b16 %v997
  %v1115 = vunpack.c.h.b16 %v997
  %v1116 = vpack.c.b16 %v1056, %v1052
  %v1117 = vpack.c.b16 %v1057, %v1053
  %v1118 = vpack.c.b16 %v1058, %v1054
  %v1119 = vpack.c.b16 %v1059, %v1055
  %v1120 = vpack.c.b16 %v1064, %v1060
  %v1121 = vpack.c.b16 %v1065, %v1061
  %v1122 = vpack.c.b16 %v1066, %v1062
  %v1123 = vpack.c.b16 %v1067, %v1063
  %v1124 = vpack.c.b16 %v1072, %v1068
  %v1125 = vpack.c.b16 %v1073, %v1069
  %v1126 = vpack.c.b16 %v1074, %v1070
  %v1127 = vpack.c.b16 %v1075, %v1071
  %v1128 = vpack.c.b16 %v1080, %v1076
  %v1129 = vpack.c.b16 %v1081, %v1077
  %v1130 = vpack.c.b16 %v1082, %v1078
  %v1131 = vpack.c.b16 %v1083, %v1079
  %v1132 = vpack.c.b16 %v1088, %v1084
  %v1133 = vpack.c.b16 %v1089, %v1085
  %v1134 = vpack.c.b16 %v1090, %v1086
  %v1135 = vpack.c.b16 %v1091, %v1087
  %v1136 = vpack.c.b16 %v1096, %v1092
  %v1137 = vpack.c.b16 %v1097, %v1093
  %v1138 = vpack.c.b16 %v1098, %v1094
  %v1139 = vpack.c.b16 %v1099, %v1095
  %v1140 = vpack.c.b16 %v1104, %v1100
  %v1141 = vpack.c.b16 %v1105, %v1101
  %v1142 = vpack.c.b16 %v1106, %v1102
  %v1143 = vpack.c.b16 %v1107, %v1103
  %v1144 = vpack.c.b16 %v1112, %v1108
  %v1145 = vpack.c.b16 %v1113, %v1109
  %v1146 = vpack.c.b16 %v1114, %v1110
  %v1147 = vpack.c.b16 %v1115, %v1111
  %1180 = vmatprep.subr.bf16.mxu0 %v1117
  %1181 = vmatpush1.bf16.msra.mxu0 %v1116
  %1182 = vmatprep.subr.bf16.mxu0 %v1121
  %1183 = vmatpush1.bf16.msra.mxu0 %v1120
  %1184 = vmatprep.subr.bf16.mxu0 %v1125
  %1185 = vmatpush1.bf16.msra.mxu0 %v1124
  %1186 = vmatprep.subr.bf16.mxu0 %v1129
  %1187 = vmatpush1.bf16.msra.mxu0 %v1128
  %1188 = vmatprep.subr.bf16.mxu0 %v1133
  %1189 = vmatpush1.bf16.msra.mxu0 %v1132
  %1190 = vmatprep.subr.bf16.mxu0 %v1137
  %1191 = vmatpush1.bf16.msra.mxu0 %v1136
  %1192 = vmatprep.subr.bf16.mxu0 %v1141
  %1193 = vmatpush1.bf16.msra.mxu0 %v1140
  %1194 = vmatprep.subr.bf16.mxu0 %v1145
  %1195 = vmatpush1.bf16.msra.mxu0 %v1144
  %1196 = vmatprep.subr.bf16.mxu0 0
  %1197 = vmatpush1.bf16.msra.mxu0 0
  %1198 = vmatprep.subr.bf16.mxu0 0
  %1199 = vmatpush1.bf16.msra.mxu0 0
  %1200 = vmatprep.subr.bf16.mxu0 0
  %1201 = vmatpush1.bf16.msra.mxu0 0
  %1202 = vmatprep.subr.bf16.mxu0 0
  %1203 = vmatpush1.bf16.msra.mxu0 0
  %1204 = vmatprep.subr.bf16.mxu0 0
  %1205 = vmatpush1.bf16.msra.mxu0 0
  %1206 = vmatprep.subr.bf16.mxu0 0
  %1207 = vmatpush1.bf16.msra.mxu0 0
  %1208 = vmatprep.subr.bf16.mxu0 0
  %1209 = vmatpush1.bf16.msra.mxu0 0
  %1210 = vmatprep.subr.bf16.mxu0 0
  %1211 = vmatpush1.bf16.msra.mxu0 0
  %1212 = vmatprep.mubr.bf16.mxu0 0
  %1213 = vmatmul.mubr.bf16.gmra.mrb[0].mxu0 %v964
  %v1214 = vpop.f32.mrb[0].mxu0
  %v1215 = vadd.f32 %v1003, %v1214
  %v1216 = vpop.f32.mrb[0].mxu0
  %v1217 = vadd.f32 %v1007, %v1216
  %v1218 = vpop.f32.mrb[0].mxu0
  %v1219 = vpop.f32.mrb[0].mxu0
  %1220 = vdwg.mxu0
  %1221 = vmatprep.subr.bf16.mxu0 %v1119
  %1222 = vmatpush1.bf16.msra.mxu0 %v1118
  %1223 = vmatprep.subr.bf16.mxu0 %v1123
  %1224 = vmatpush1.bf16.msra.mxu0 %v1122
  %1225 = vmatprep.subr.bf16.mxu0 %v1127
  %1226 = vmatpush1.bf16.msra.mxu0 %v1126
  %1227 = vmatprep.subr.bf16.mxu0 %v1131
  %1228 = vmatpush1.bf16.msra.mxu0 %v1130
  %1229 = vmatprep.subr.bf16.mxu0 %v1135
  %1230 = vmatpush1.bf16.msra.mxu0 %v1134
  %1231 = vmatprep.subr.bf16.mxu0 %v1139
  %1232 = vmatpush1.bf16.msra.mxu0 %v1138
  %1233 = vmatprep.subr.bf16.mxu0 %v1143
  %1234 = vmatpush1.bf16.msra.mxu0 %v1142
  %1235 = vmatprep.subr.bf16.mxu0 %v1147
  %1236 = vmatpush1.bf16.msra.mxu0 %v1146
  %1237 = vmatprep.subr.bf16.mxu0 0
  %1238 = vmatpush1.bf16.msra.mxu0 0
  %1239 = vmatprep.subr.bf16.mxu0 0
  %1240 = vmatpush1.bf16.msra.mxu0 0
  %1241 = vmatprep.subr.bf16.mxu0 0
  %1242 = vmatpush1.bf16.msra.mxu0 0
  %1243 = vmatprep.subr.bf16.mxu0 0
  %1244 = vmatpush1.bf16.msra.mxu0 0
  %1245 = vmatprep.subr.bf16.mxu0 0
  %1246 = vmatpush1.bf16.msra.mxu0 0
  %1247 = vmatprep.subr.bf16.mxu0 0
  %1248 = vmatpush1.bf16.msra.mxu0 0
  %1249 = vmatprep.subr.bf16.mxu0 0
  %1250 = vmatpush1.bf16.msra.mxu0 0
  %1251 = vmatprep.subr.bf16.mxu0 0
  %1252 = vmatpush1.bf16.msra.mxu0 0
  %1253 = vmatprep.mubr.bf16.mxu0 0
  %1254 = vmatmul.mubr.bf16.gmra.mrb[0].mxu0 %v964
  %v1255 = vpop.f32.mrb[0].mxu0
  %v1256 = vadd.f32 %v1011, %v1255
  %v1257 = vpop.f32.mrb[0].mxu0
  %v1258 = vadd.f32 %v1015, %v1257
  %v1259 = vpop.f32.mrb[0].mxu0
  %v1260 = vpop.f32.mrb[0].mxu0
  %1261 = vdwg.mxu0
  %v1262 = vmax.f32 %v1215, 0.0
  %v1263 = vmax.f32 %v1217, 0.0
  %v1264 = vmax.f32 %v1256, 0.0
  %v1265 = vmax.f32 %v1258, 0.0
  %v1266 = vpack.c.bf16 %v1262, %v1262
  %v1267 = vpack.c.bf16 %v1263, %v1263
  %v1268 = vpack.c.bf16 %v1264, %v1264
  %v1269 = vpack.c.bf16 %v1265, %v1265
  %v1270 = vld [vmem:[%s7] sm:$0xf]
  %v1271 = vld [vmem:[%s7 + $0x4] sm:$0xf]
  %v1272 = vld [vmem:[%s7 + $0x8] sm:$0xf]
  %v1273 = vld [vmem:[%s7 + $0xc] sm:$0xf]
  %v1274 = vld [vmem:[%s7 + $0x10] sm:$0xf]
  %v1275 = vld [vmem:[%s7 + $0x14] sm:$0xf]
  %v1276 = vld [vmem:[%s7 + $0x18] sm:$0xf]
  %v1277 = vld [vmem:[%s7 + $0x1c] sm:$0xf]
  %v1278 = vld [vmem:[%s7 + $0x20] sm:$0xf]
  %v1279 = vld [vmem:[%s7 + $0x24] sm:$0xf]
  %v1280 = vld [vmem:[%s7 + $0x28] sm:$0xf]
  %v1281 = vld [vmem:[%s7 + $0x2c] sm:$0xf]
  %v1282 = vld [vmem:[%s7 + $0x30] sm:$0xf]
  %v1283 = vld [vmem:[%s7 + $0x34] sm:$0xf]
  %v1284 = vld [vmem:[%s7 + $0x38] sm:$0xf]
  %v1285 = vld [vmem:[%s7 + $0x3c] sm:$0xf]
  %v1286 = vld [vmem:[%s7 + $0x40] sm:$0xf]
  %v1287 = vld [vmem:[%s7 + $0x44] sm:$0xf]
  %v1288 = vld [vmem:[%s7 + $0x48] sm:$0xf]
  %v1289 = vld [vmem:[%s7 + $0x4c] sm:$0xf]
  %v1290 = vld [vmem:[%s7 + $0x50] sm:$0xf]
  %v1291 = vld [vmem:[%s7 + $0x54] sm:$0xf]
  %v1292 = vld [vmem:[%s7 + $0x58] sm:$0xf]
  %v1293 = vld [vmem:[%s7 + $0x5c] sm:$0xf]
  %v1294 = vld [vmem:[%s7 + $0x60] sm:$0xf]
  %v1295 = vld [vmem:[%s7 + $0x64] sm:$0xf]
  %v1296 = vld [vmem:[%s7 + $0x68] sm:$0xf]
  %v1297 = vld [vmem:[%s7 + $0x6c] sm:$0xf]
  %v1298 = vld [vmem:[%s7 + $0x70] sm:$0xf]
  %v1299 = vld [vmem:[%s7 + $0x74] sm:$0xf]
  %v1300 = vld [vmem:[%s7 + $0x78] sm:$0xf]
  %v1301 = vld [vmem:[%s7 + $0x7c] sm:$0xf]
  %v1302 = vld [vmem:[%s7 + $0x80] sm:$0xf]
  %v1303 = vld [vmem:[%s7 + $0x84] sm:$0xf]
  %v1304 = vld [vmem:[%s7 + $0x88] sm:$0xf]
  %v1305 = vld [vmem:[%s7 + $0x8c] sm:$0xf]
  %v1306 = vld [vmem:[%s7 + $0x90] sm:$0xf]
  %v1307 = vld [vmem:[%s7 + $0x94] sm:$0xf]
  %v1308 = vld [vmem:[%s7 + $0x98] sm:$0xf]
  %v1309 = vld [vmem:[%s7 + $0x9c] sm:$0xf]
  %v1310 = vld [vmem:[%s7 + $0xa0] sm:$0xf]
  %v1311 = vld [vmem:[%s7 + $0xa4] sm:$0xf]
  %v1312 = vld [vmem:[%s7 + $0xa8] sm:$0xf]
  %v1313 = vld [vmem:[%s7 + $0xac] sm:$0xf]
  %v1314 = vld [vmem:[%s7 + $0xb0] sm:$0xf]
  %v1315 = vld [vmem:[%s7 + $0xb4] sm:$0xf]
  %v1316 = vld [vmem:[%s7 + $0xb8] sm:$0xf]
  %v1317 = vld [vmem:[%s7 + $0xbc] sm:$0xf]
  %v1318 = vld [vmem:[%s7 + $0xc0] sm:$0xf]
  %v1319 = vld [vmem:[%s7 + $0xc4] sm:$0xf]
  %v1320 = vld [vmem:[%s7 + $0xc8] sm:$0xf]
  %v1321 = vld [vmem:[%s7 + $0xcc] sm:$0xf]
  %v1322 = vld [vmem:[%s7 + $0xd0] sm:$0xf]
  %v1323 = vld [vmem:[%s7 + $0xd4] sm:$0xf]
  %v1324 = vld [vmem:[%s7 + $0xd8] sm:$0xf]
  %v1325 = vld [vmem:[%s7 + $0xdc] sm:$0xf]
  %v1326 = vld [vmem:[%s7 + $0xe0] sm:$0xf]
  %v1327 = vld [vmem:[%s7 + $0xe4] sm:$0xf]
  %v1328 = vld [vmem:[%s7 + $0xe8] sm:$0xf]
  %v1329 = vld [vmem:[%s7 + $0xec] sm:$0xf]
  %v1330 = vld [vmem:[%s7 + $0xf0] sm:$0xf]
  %v1331 = vld [vmem:[%s7 + $0xf4] sm:$0xf]
  %v1332 = vld [vmem:[%s7 + $0xf8] sm:$0xf]
  %v1333 = vld [vmem:[%s7 + $0xfc] sm:$0xf]
  %v1334 = vld [vmem:[%s8] sm:$0x1]
  %v1336 = vlaneseq
  %v1337 = vshrl.u32 %v1336, 7
  %v1338 = vsub.s32 0, %v1337
  %v1339 = vrot.slane %v1334, %v1338
  %v1405 = vunpack.c.l.b16 %v1270
  %v1406 = vunpack.c.l.b16 %v1271
  %v1407 = vunpack.c.l.b16 %v1272
  %v1408 = vunpack.c.l.b16 %v1273
  %v1409 = vunpack.c.l.b16 %v1274
  %v1410 = vunpack.c.l.b16 %v1275
  %v1411 = vunpack.c.l.b16 %v1276
  %v1412 = vunpack.c.l.b16 %v1277
  %v1413 = vunpack.c.l.b16 %v1278
  %v1414 = vunpack.c.l.b16 %v1279
  %v1415 = vunpack.c.l.b16 %v1280
  %v1416 = vunpack.c.l.b16 %v1281
  %v1417 = vunpack.c.l.b16 %v1282
  %v1418 = vunpack.c.l.b16 %v1283
  %v1419 = vunpack.c.l.b16 %v1284
  %v1420 = vunpack.c.l.b16 %v1285
  %v1421 = vunpack.c.l.b16 %v1286
  %v1422 = vunpack.c.l.b16 %v1287
  %v1423 = vunpack.c.l.b16 %v1288
  %v1424 = vunpack.c.l.b16 %v1289
  %v1425 = vunpack.c.l.b16 %v1290
  %v1426 = vunpack.c.l.b16 %v1291
  %v1427 = vunpack.c.l.b16 %v1292
  %v1428 = vunpack.c.l.b16 %v1293
  %v1429 = vunpack.c.l.b16 %v1294
  %v1430 = vunpack.c.l.b16 %v1295
  %v1431 = vunpack.c.l.b16 %v1296
  %v1432 = vunpack.c.l.b16 %v1297
  %v1433 = vunpack.c.l.b16 %v1298
  %v1434 = vunpack.c.l.b16 %v1299
  %v1435 = vunpack.c.l.b16 %v1300
  %v1436 = vunpack.c.l.b16 %v1301
  %v1437 = vunpack.c.l.b16 %v1302
  %v1438 = vunpack.c.l.b16 %v1303
  %v1439 = vunpack.c.l.b16 %v1304
  %v1440 = vunpack.c.l.b16 %v1305
  %v1441 = vunpack.c.l.b16 %v1306
  %v1442 = vunpack.c.l.b16 %v1307
  %v1443 = vunpack.c.l.b16 %v1308
  %v1444 = vunpack.c.l.b16 %v1309
  %v1445 = vunpack.c.l.b16 %v1310
  %v1446 = vunpack.c.l.b16 %v1311
  %v1447 = vunpack.c.l.b16 %v1312
  %v1448 = vunpack.c.l.b16 %v1313
  %v1449 = vunpack.c.l.b16 %v1314
  %v1450 = vunpack.c.l.b16 %v1315
  %v1451 = vunpack.c.l.b16 %v1316
  %v1452 = vunpack.c.l.b16 %v1317
  %v1453 = vunpack.c.l.b16 %v1318
  %v1454 = vunpack.c.l.b16 %v1319
  %v1455 = vunpack.c.l.b16 %v1320
  %v1456 = vunpack.c.l.b16 %v1321
  %v1457 = vunpack.c.l.b16 %v1322
  %v1458 = vunpack.c.l.b16 %v1323
  %v1459 = vunpack.c.l.b16 %v1324
  %v1460 = vunpack.c.l.b16 %v1325
  %v1461 = vunpack.c.l.b16 %v1326
  %v1462 = vunpack.c.l.b16 %v1327
  %v1463 = vunpack.c.l.b16 %v1328
  %v1464 = vunpack.c.l.b16 %v1329
  %v1465 = vunpack.c.l.b16 %v1330
  %v1466 = vunpack.c.l.b16 %v1331
  %v1467 = vunpack.c.l.b16 %v1332
  %v1468 = vunpack.c.l.b16 %v1333
  %v1469 = vpack.c.b16 %v1406, %v1405
  %v1470 = vpack.c.b16 %v1408, %v1407
  %v1471 = vpack.c.b16 %v1410, %v1409
  %v1472 = vpack.c.b16 %v1412, %v1411
  %v1473 = vpack.c.b16 %v1414, %v1413
  %v1474 = vpack.c.b16 %v1416, %v1415
  %v1475 = vpack.c.b16 %v1418, %v1417
  %v1476 = vpack.c.b16 %v1420, %v1419
  %v1477 = vpack.c.b16 %v1422, %v1421
  %v1478 = vpack.c.b16 %v1424, %v1423
  %v1479 = vpack.c.b16 %v1426, %v1425
  %v1480 = vpack.c.b16 %v1428, %v1427
  %v1481 = vpack.c.b16 %v1430, %v1429
  %v1482 = vpack.c.b16 %v1432, %v1431
  %v1483 = vpack.c.b16 %v1434, %v1433
  %v1484 = vpack.c.b16 %v1436, %v1435
  %v1485 = vpack.c.b16 %v1438, %v1437
  %v1486 = vpack.c.b16 %v1440, %v1439
  %v1487 = vpack.c.b16 %v1442, %v1441
  %v1488 = vpack.c.b16 %v1444, %v1443
  %v1489 = vpack.c.b16 %v1446, %v1445
  %v1490 = vpack.c.b16 %v1448, %v1447
  %v1491 = vpack.c.b16 %v1450, %v1449
  %v1492 = vpack.c.b16 %v1452, %v1451
  %v1493 = vpack.c.b16 %v1454, %v1453
  %v1494 = vpack.c.b16 %v1456, %v1455
  %v1495 = vpack.c.b16 %v1458, %v1457
  %v1496 = vpack.c.b16 %v1460, %v1459
  %v1497 = vpack.c.b16 %v1462, %v1461
  %v1498 = vpack.c.b16 %v1464, %v1463
  %v1499 = vpack.c.b16 %v1466, %v1465
  %v1500 = vpack.c.b16 %v1468, %v1467
  %1533 = vmatprep.subr.bf16.mxu0 0
  %1534 = vmatpush1.bf16.msra.mxu0 %v1469
  %1535 = vmatprep.subr.bf16.mxu0 0
  %1536 = vmatpush1.bf16.msra.mxu0 %v1470
  %1537 = vmatprep.subr.bf16.mxu0 0
  %1538 = vmatpush1.bf16.msra.mxu0 %v1471
  %1539 = vmatprep.subr.bf16.mxu0 0
  %1540 = vmatpush1.bf16.msra.mxu0 %v1472
  %1541 = vmatprep.subr.bf16.mxu0 0
  %1542 = vmatpush1.bf16.msra.mxu0 %v1473
  %1543 = vmatprep.subr.bf16.mxu0 0
  %1544 = vmatpush1.bf16.msra.mxu0 %v1474
  %1545 = vmatprep.subr.bf16.mxu0 0
  %1546 = vmatpush1.bf16.msra.mxu0 %v1475
  %1547 = vmatprep.subr.bf16.mxu0 0
  %1548 = vmatpush1.bf16.msra.mxu0 %v1476
  %1549 = vmatprep.subr.bf16.mxu0 0
  %1550 = vmatpush1.bf16.msra.mxu0 %v1477
  %1551 = vmatprep.subr.bf16.mxu0 0
  %1552 = vmatpush1.bf16.msra.mxu0 %v1478
  %1553 = vmatprep.subr.bf16.mxu0 0
  %1554 = vmatpush1.bf16.msra.mxu0 %v1479
  %1555 = vmatprep.subr.bf16.mxu0 0
  %1556 = vmatpush1.bf16.msra.mxu0 %v1480
  %1557 = vmatprep.subr.bf16.mxu0 0
  %1558 = vmatpush1.bf16.msra.mxu0 %v1481
  %1559 = vmatprep.subr.bf16.mxu0 0
  %1560 = vmatpush1.bf16.msra.mxu0 %v1482
  %1561 = vmatprep.subr.bf16.mxu0 0
  %1562 = vmatpush1.bf16.msra.mxu0 %v1483
  %1563 = vmatprep.subr.bf16.mxu0 0
  %1564 = vmatpush1.bf16.msra.mxu0 %v1484
  %1565 = vmatprep.mubr.bf16.mxu0 %v1267
  %1566 = vmatmul.mubr.bf16.gmra.mrb[0].mxu0 %v1266
  %v1567 = vpop.f32.mrb[0].mxu0
  %v1568 = vadd.f32 %v1339, %v1567
  %v1569 = vpop.f32.mrb[0].mxu0
  %v1570 = vpop.f32.mrb[0].mxu0
  %v1571 = vpop.f32.mrb[0].mxu0
  %1572 = vdwg.mxu0
  %1573 = vmatprep.subr.bf16.mxu0 0
  %1574 = vmatpush1.bf16.msra.mxu0 %v1485
  %1575 = vmatprep.subr.bf16.mxu0 0
  %1576 = vmatpush1.bf16.msra.mxu0 %v1486
  %1577 = vmatprep.subr.bf16.mxu0 0
  %1578 = vmatpush1.bf16.msra.mxu0 %v1487
  %1579 = vmatprep.subr.bf16.mxu0 0
  %1580 = vmatpush1.bf16.msra.mxu0 %v1488
  %1581 = vmatprep.subr.bf16.mxu0 0
  %1582 = vmatpush1.bf16.msra.mxu0 %v1489
  %1583 = vmatprep.subr.bf16.mxu0 0
  %1584 = vmatpush1.bf16.msra.mxu0 %v1490
  %1585 = vmatprep.subr.bf16.mxu0 0
  %1586 = vmatpush1.bf16.msra.mxu0 %v1491
  %1587 = vmatprep.subr.bf16.mxu0 0
  %1588 = vmatpush1.bf16.msra.mxu0 %v1492
  %1589 = vmatprep.subr.bf16.mxu0 0
  %1590 = vmatpush1.bf16.msra.mxu0 %v1493
  %1591 = vmatprep.subr.bf16.mxu0 0
  %1592 = vmatpush1.bf16.msra.mxu0 %v1494
  %1593 = vmatprep.subr.bf16.mxu0 0
  %1594 = vmatpush1.bf16.msra.mxu0 %v1495
  %1595 = vmatprep.subr.bf16.mxu0 0
  %1596 = vmatpush1.bf16.msra.mxu0 %v1496
  %1597 = vmatprep.subr.bf16.mxu0 0
  %1598 = vmatpush1.bf16.msra.mxu0 %v1497
  %1599 = vmatprep.subr.bf16.mxu0 0
  %1600 = vmatpush1.bf16.msra.mxu0 %v1498
  %1601 = vmatprep.subr.bf16.mxu0 0
  %1602 = vmatpush1.bf16.msra.mxu0 %v1499
  %1603 = vmatprep.subr.bf16.mxu0 0
  %1604 = vmatpush1.bf16.msra.mxu0 %v1500
  %1605 = vmatprep.mubr.bf16.mxu0 %v1269
  %1606 = vmatmul.mubr.bf16.gmra.mrb[0].mxu0 %v1268
  %v1607 = vpop.f32.mrb[0].mxu0
  %v1608 = vadd.f32 %v1568, %v1607
  %v1609 = vpop.f32.mrb[0].mxu0
  %v1610 = vpop.f32.mrb[0].mxu0
  %v1611 = vpop.f32.mrb[0].mxu0
  %1612 = vdwg.mxu0
  %1613 = vst [vmem:[%s9] sm:$0xff] %v1608
  // Predicated region
  $region38: #{mnist_cnn_forward.1} parent=0 // pred_check
    _
  $region39: #{mnist_cnn_forward.1} parent=0 // pred_check_branch
    %1615 = sbr.rel (0) target = $region41
  $region40: #{mnist_cnn_forward.1} parent=0 // pred_region
    _
  $region41: #{mnist_cnn_forward.1} parent=0 // pred_fallthru
    _
  // Predicated region
  $region42: #{mnist_cnn_forward.1} parent=0 // pred_check
    _
  $region43: #{mnist_cnn_forward.1} parent=0 // pred_check_branch
    %1617 = sbr.rel (0) target = $region45
  $region44: #{mnist_cnn_forward.1} parent=0 // pred_region
    _
  $region45: #{mnist_cnn_forward.1} parent=0 // pred_fallthru
    _

</llo_original>
